<compile_context>
chip_gen: v6e
topology: v6e:2x2x1
jax: 0.10.0
libtpu: 0.0.40
codegen_flags: <defaults>
</compile_context>

<pallas_src>
import functools

import jax
import jax.numpy as jnp
from jax.experimental import pallas as pl
from jax.experimental.pallas import tpu as pltpu

f32 = jnp.float32
bf16 = jnp.bfloat16
EXPANSION = 4  # Bottleneck expansion


def _rup(x, m):
    return ((x + m - 1) // m) * m


# ----------------------------------------------------------------------------
# Pallas kernels
# ----------------------------------------------------------------------------

def _mm_kernel(*refs, act, has_res, single_k):
    """Tiled matmul with fused scale/shift (+ optional residual add, ReLU)."""
    if has_res:
        x_ref, w_ref, sc_ref, sh_ref, res_ref = refs[:5]
        rest = refs[5:]
    else:
        x_ref, w_ref, sc_ref, sh_ref = refs[:4]
        res_ref = None
        rest = refs[4:]

    def epilogue(acc):
        r = acc * sc_ref[...] + sh_ref[...]
        if has_res:
            r = r + res_ref[...]
        if act == "relu":
            r = jnp.maximum(r, 0.0)
        return r

    if single_k:
        (o_ref,) = rest
        acc = jnp.dot(x_ref[...], w_ref[...], preferred_element_type=jnp.float32)
        o_ref[...] = epilogue(acc).astype(o_ref.dtype)
        return

    o_ref, acc_ref = rest
    k = pl.program_id(2)

    @pl.when(k == 0)
    def _():
        acc_ref[...] = jnp.zeros_like(acc_ref)

    acc_ref[...] += jnp.dot(x_ref[...], w_ref[...],
                            preferred_element_type=jnp.float32)

    @pl.when(k == pl.num_programs(2) - 1)
    def _():
        o_ref[...] = epilogue(acc_ref[...]).astype(o_ref.dtype)


@functools.lru_cache(maxsize=None)
def _mm_fn(Mp, Kp, Np, tm, tk, tn, act, has_res):
    nk = Kp // tk
    single_k = nk == 1
    grid = (Mp // tm, Np // tn, nk)
    in_specs = [
        pl.BlockSpec((tm, tk), lambda i, j, k: (i, k)),   # x (bf16)
        pl.BlockSpec((tk, tn), lambda i, j, k: (k, j)),   # w (bf16)
        pl.BlockSpec((1, tn), lambda i, j, k: (0, j)),    # scale (f32)
        pl.BlockSpec((1, tn), lambda i, j, k: (0, j)),    # shift (f32)
    ]
    if has_res:
        in_specs.append(pl.BlockSpec((tm, tn), lambda i, j, k: (i, j)))  # residual

    scratch = [] if single_k else [pltpu.VMEM((tm, tn), jnp.float32)]
    bytes_accessed = (Mp * Kp * 2 + Kp * Np * 2 + Mp * Np * 4
                      + (Mp * Np * 4 if has_res else 0) + 2 * Np * 4)
    f = pl.pallas_call(
        functools.partial(_mm_kernel, act=act, has_res=has_res,
                          single_k=single_k),
        out_shape=jax.ShapeDtypeStruct((Mp, Np), f32),
        grid_spec=pltpu.PrefetchScalarGridSpec(
            num_scalar_prefetch=0,
            grid=grid,
            in_specs=in_specs,
            out_specs=pl.BlockSpec((tm, tn), lambda i, j, k: (i, j)),
            scratch_shapes=scratch,
        ),
        compiler_params=pltpu.CompilerParams(
            dimension_semantics=("parallel", "parallel", "arbitrary"),
            vmem_limit_bytes=32 * 1024 * 1024),
        cost_estimate=pl.CostEstimate(
            flops=2 * Mp * Kp * Np, transcendentals=0,
            bytes_accessed=bytes_accessed),
    )
    return jax.jit(f)


def matmul_scale_shift(x, w, scale, shift, act=None, residual=None):
    """(M,K) @ (K,N), per-column scale/shift (+ residual, ReLU), in Pallas.

    x/w are cast to bf16 for the MXU; accumulation and epilogue stay f32.
    """
    M, K = x.shape
    _, N = w.shape

    # K panel: whole K in one panel when small (single-K kernel, no k-loop),
    # else pad K up to a multiple of 512 (zero padding contributes nothing).
    if K <= 1024:
        tk = _rup(K, 128)
    else:
        tk = 512
    Kp = _rup(K, tk)

    Np = _rup(N, 128)
    tn = next(t for t in (512, 256, 128) if Np % t == 0)

    Mp = _rup(M, 16)
    if Mp > 512:
        tm = 512 if (_rup(M, 512) - M) <= 256 else 256
        Mp = _rup(M, tm)
    else:
        tm = Mp

    xp = jnp.pad(x.astype(bf16), ((0, Mp - M), (0, Kp - K)))
    wp = jnp.pad(w.astype(bf16), ((0, Kp - K), (0, Np - N)))
    scp = jnp.pad(scale.astype(f32), (0, Np - N)).reshape(1, Np)
    shp = jnp.pad(shift.astype(f32), (0, Np - N)).reshape(1, Np)
    args = [xp, wp, scp, shp]
    has_res = residual is not None
    if has_res:
        args.append(jnp.pad(residual.astype(f32), ((0, Mp - M), (0, Np - N))))

    out = _mm_fn(Mp, Kp, Np, tm, tk, tn, act, has_res)(*args)
    return out[:M, :N]


def _max_reduce_kernel(x_ref, o_ref):
    o_ref[...] = jnp.max(x_ref[...], axis=0)


@functools.lru_cache(maxsize=None)
def _max_fn(KK, Mp, Cp, tm):
    f = pl.pallas_call(
        _max_reduce_kernel,
        out_shape=jax.ShapeDtypeStruct((Mp, Cp), f32),
        grid=(Mp // tm,),
        in_specs=[pl.BlockSpec((KK, tm, Cp), lambda i: (0, i, 0))],
        out_specs=pl.BlockSpec((tm, Cp), lambda i: (i, 0)),
        compiler_params=pltpu.CompilerParams(
            dimension_semantics=("parallel",)),
    )
    return jax.jit(f)


# ----------------------------------------------------------------------------
# Op wrappers (im2col / window-stack glue in plain JAX, compute in Pallas)
# ----------------------------------------------------------------------------

def _im2col(x, kh, kw, stride, pad):
    N, H, W, C = x.shape
    if pad:
        x = jnp.pad(x, ((0, 0), (pad, pad), (pad, pad), (0, 0)))
    Hp, Wp = H + 2 * pad, W + 2 * pad
    oh = (Hp - kh) // stride + 1
    ow = (Wp - kw) // stride + 1
    if kh == 1 and kw == 1:
        p = x[:, ::stride, ::stride, :]
        return p.reshape(N * oh * ow, C), (N, oh, ow)
    cols = []
    for i in range(kh):
        for j in range(kw):
            cols.append(x[:, i:i + oh * stride:stride, j:j + ow * stride:stride, :])
    p = jnp.stack(cols, axis=3)  # (N, oh, ow, kh*kw, C)
    return p.reshape(N * oh * ow, kh * kw * C), (N, oh, ow)


def conv2d(x, p, *, stride=1, pad=0, act=None, bn=None, residual=None):
    w = p["w"]
    kh, kw, cin, cout = w.shape
    patches, (N, oh, ow) = _im2col(x, kh, kw, stride, pad)
    wm = w.reshape(kh * kw * cin, cout)
    if bn is None:
        scale = jnp.ones((cout,), f32)
        shift = p["b"]
    else:
        scale = bn["gamma"] / jnp.sqrt(bn["var"] + 1e-5)
        shift = bn["beta"] - bn["mean"] * scale + scale * p["b"]
    res2d = None
    if residual is not None:
        res2d = residual.reshape(N * oh * ow, cout)
    out = matmul_scale_shift(patches, wm, scale, shift, act=act, residual=res2d)
    return out.reshape(N, oh, ow, cout)


def conv1x1_merged(x, plist, act=None):
    """Run several 1x1 convs that share the same input as one matmul."""
    w = jnp.concatenate([p["w"] for p in plist], axis=-1)
    b = jnp.concatenate([p["b"] for p in plist], axis=-1)
    out = conv2d(x, {"w": w, "b": b}, act=act)
    outs, start = [], 0
    for p in plist:
        c = p["w"].shape[-1]
        outs.append(out[..., start:start + c])
        start += c
    return outs


def maxpool2d(x, k, stride, pad=0):
    N, H, W, C = x.shape
    if pad:
        x = jnp.pad(x, ((0, 0), (pad, pad), (pad, pad), (0, 0)),
                    constant_values=-jnp.inf)
    Hp, Wp = H + 2 * pad, W + 2 * pad
    oh = (Hp - k) // stride + 1
    ow = (Wp - k) // stride + 1
    cols = []
    for i in range(k):
        for j in range(k):
            cols.append(x[:, i:i + oh * stride:stride, j:j + ow * stride:stride, :])
    win = jnp.stack(cols, axis=0).reshape(k * k, N * oh * ow, C)
    M = N * oh * ow
    KK = k * k
    Cp = _rup(C, 128)
    # Keep each input block to ~2 MiB so the pipeline can double-buffer.
    tm_cap = max(8, min(512, ((2 * 1024 * 1024) // (KK * Cp * 4)) // 8 * 8))
    Mp = _rup(M, 8)
    tm = min(tm_cap, Mp)
    Mp = _rup(M, tm)
    win = jnp.pad(win, ((0, 0), (0, Mp - M), (0, Cp - C)))
    out = _max_fn(KK, Mp, Cp, tm)(win)
    return out[:M, :C].reshape(N, oh, ow, C)


def upsample_nearest(x, factor):
    x = jnp.repeat(x, factor, axis=1)
    return jnp.repeat(x, factor, axis=2)


# ----------------------------------------------------------------------------
# Parameters (deterministic, synthetic)
# ----------------------------------------------------------------------------

class KeyGen:
    def __init__(self, key):
        self.key = key

    def __call__(self):
        self.key, sub = jax.random.split(self.key)
        return sub


def conv_p(kg, kh, kw, cin, cout, bias=True):
    fan_in = kh * kw * cin
    w = jax.random.normal(kg(), (kh, kw, cin, cout), f32) * jnp.sqrt(2.0 / fan_in)
    b = (jax.random.normal(kg(), (cout,), f32) * 0.01) if bias else jnp.zeros((cout,), f32)
    return {"w": w, "b": b}


def bn_p(c):
    return {"gamma": jnp.ones((c,), f32), "beta": jnp.zeros((c,), f32),
            "mean": jnp.zeros((c,), f32), "var": jnp.ones((c,), f32)}


def bottleneck_p(kg, in_planes, planes, stride):
    p = {
        "conv1": conv_p(kg, 1, 1, in_planes, planes, bias=False), "bn1": bn_p(planes),
        "conv2": conv_p(kg, 3, 3, planes, planes, bias=False), "bn2": bn_p(planes),
        "conv3": conv_p(kg, 1, 1, planes, planes * EXPANSION, bias=False),
        "bn3": bn_p(planes * EXPANSION),
    }
    if stride != 1 or in_planes != planes * EXPANSION:
        p["sc_conv"] = conv_p(kg, 1, 1, in_planes, planes * EXPANSION, bias=False)
        p["sc_bn"] = bn_p(planes * EXPANSION)
    return p


def bottleneck_fwd(x, p, stride):
    out = conv2d(x, p["conv1"], stride=1, pad=0, act="relu", bn=p["bn1"])
    out = conv2d(out, p["conv2"], stride=stride, pad=1, act="relu", bn=p["bn2"])
    if "sc_conv" in p:
        sc = conv2d(x, p["sc_conv"], stride=stride, pad=0, act=None, bn=p["sc_bn"])
    else:
        sc = x
    # conv3 + BN + residual add + ReLU fused into a single Pallas matmul epilogue.
    return conv2d(out, p["conv3"], stride=1, pad=0, act="relu", bn=p["bn3"],
                  residual=sc)


def run_layer(x, blocks, first_stride):
    for bi, blk in enumerate(blocks):
        x = bottleneck_fwd(x, blk, first_stride if bi == 0 else 1)
    return x


# add_extras(size='512', in_channel=2048):  (cin, cout, k, stride, pad)
EXTRAS_CFG = [
    (2048, 256, 1, 1, 0), (256, 256, 3, 2, 1),
    (256, 128, 1, 1, 0), (128, 256, 3, 2, 1),
    (256, 128, 1, 1, 0), (128, 256, 3, 2, 1),
    (256, 128, 1, 1, 0), (128, 256, 3, 2, 1),
]

CS = 48  # channel_size='48'
LAYER_STRIDES = (1, 2, 2, 2)


def init_params(seed=0, num_blocks=(1, 1, 1, 1)):
    kg = KeyGen(jax.random.PRNGKey(seed))
    P = {}
    P["conv1"] = conv_p(kg, 7, 7, 3, 64, bias=False)
    P["bn1"] = bn_p(64)

    in_planes = [64]

    def make_layer(planes, n, stride):
        strides = [stride] + [1] * (n - 1)
        blocks = []
        for s in strides:
            blocks.append(bottleneck_p(kg, in_planes[0], planes, s))
            in_planes[0] = planes * EXPANSION
        return blocks

    P["layer1"] = make_layer(64, num_blocks[0], LAYER_STRIDES[0])
    P["layer2"] = make_layer(128, num_blocks[1], LAYER_STRIDES[1])
    P["layer3"] = make_layer(256, num_blocks[2], LAYER_STRIDES[2])
    P["layer4"] = make_layer(512, num_blocks[3], LAYER_STRIDES[3])

    P["extras"] = [conv_p(kg, k, k, ci, co) for (ci, co, k, s, pd) in EXTRAS_CFG]

    # Reconstructed dense_list_res branches (pool / 1x1 conv / nearest upsample).
    P["dl0_conv"] = [conv_p(kg, 1, 1, 256, CS) for _ in range(3)]
    P["dl1_conv"] = [conv_p(kg, 1, 1, 512, CS) for _ in range(3)]
    P["dl2_conv0"] = conv_p(kg, 1, 1, 1024, CS)
    P["dl2_conv4"] = conv_p(kg, 1, 1, 1024, CS)
    P["dl2_conv5"] = conv_p(kg, 1, 1, 1024, CS)
    P["dl3_conv0"] = conv_p(kg, 1, 1, 2048, CS)
    P["dl3_conv1"] = conv_p(kg, 1, 1, 2048, CS)
    P["dl3_conv5"] = conv_p(kg, 1, 1, 2048, CS)
    P["dl4_conv"] = [conv_p(kg, 1, 1, 256, CS) for _ in range(3)]
    P["smooth1"] = conv_p(kg, 3, 3, 2048, 512)
    P["dl5"] = [conv_p(kg, 3, 3, CS + 512 + 3 * CS, 256),
                conv_p(kg, 3, 3, 2 * CS + 1024 + 2 * CS, 256),
                conv_p(kg, 3, 3, 3 * CS + 512 + CS, 256),
                conv_p(kg, 3, 3, 3 * CS + 256, 256)]
    return P


# ----------------------------------------------------------------------------
# Forward (mirrors DenseSSDResnet.forward)
# ----------------------------------------------------------------------------

def forward(P, x):
    # layout: x is NHWC
    c1 = conv2d(x, P["conv1"], stride=2, pad=3, act="relu", bn=P["bn1"])
    c1 = maxpool2d(c1, 3, 2, pad=1)

    c2 = run_layer(c1, P["layer1"], LAYER_STRIDES[0])
    dense1_p1 = maxpool2d(c2, 2, 2)
    dense1_p2 = maxpool2d(dense1_p1, 2, 2)
    dense1_p3 = maxpool2d(dense1_p2, 2, 2)
    dense1_p1_conv = conv2d(dense1_p1, P["dl0_conv"][0])
    dense1_p2_conv = conv2d(dense1_p2, P["dl0_conv"][1])
    dense1_p3_conv = conv2d(dense1_p3, P["dl0_conv"][2])

    c3 = run_layer(c2, P["layer2"], LAYER_STRIDES[1])
    dense2_p1 = maxpool2d(c3, 2, 2)
    dense2_p2 = maxpool2d(dense2_p1, 2, 2)
    dense2_p3 = maxpool2d(dense2_p2, 2, 2)
    dense2_p1_conv = conv2d(dense2_p1, P["dl1_conv"][0])
    dense2_p2_conv = conv2d(dense2_p2, P["dl1_conv"][1])
    dense2_p3_conv = conv2d(dense2_p3, P["dl1_conv"][2])

    c4 = run_layer(c3, P["layer3"], LAYER_STRIDES[2])
    dense3_up_conv = conv2d(c4, P["dl2_conv0"])
    dense3_up = upsample_nearest(dense3_up_conv, 2)
    dense3_p1 = maxpool2d(c4, 2, 2)
    dense3_p2 = maxpool2d(dense3_p1, 2, 2)
    dense3_p1_conv = conv2d(dense3_p1, P["dl2_conv4"])
    dense3_p2_conv = conv2d(dense3_p2, P["dl2_conv5"])

    c5 = run_layer(c4, P["layer4"], LAYER_STRIDES[3])
    c5_ = conv2d(c5, P["smooth1"], stride=1, pad=1)
    # The two 1x1 convs that both consume c5 are merged into one matmul.
    dense4_up1_conv, dense4_up2_conv = conv1x1_merged(
        c5, [P["dl3_conv0"], P["dl3_conv1"]])
    dense4_up1 = upsample_nearest(dense4_up1_conv, 2)
    dense4_up2 = upsample_nearest(dense4_up2_conv, 4)
    dense4_p = maxpool2d(c5, 2, 2)
    dense4_p_conv = conv2d(dense4_p, P["dl3_conv5"])

    _, _, k0, s0, pd0 = EXTRAS_CFG[0]
    p6 = conv2d(c5, P["extras"][0], stride=s0, pad=pd0, act="relu")
    _, _, k1, s1, pd1 = EXTRAS_CFG[1]
    p6 = conv2d(p6, P["extras"][1], stride=s1, pad=pd1, act="relu")
    x_e = p6

    # The three 1x1 convs on p6 are merged into one matmul.
    dense5_up1_conv, dense5_up2_conv, dense5_up3_conv = conv1x1_merged(
        p6, P["dl4_conv"])
    dense5_up1 = upsample_nearest(dense5_up1_conv, 2)
    dense5_up2 = upsample_nearest(dense5_up2_conv, 4)
    dense5_up3 = upsample_nearest(dense5_up3_conv, 8)

    dense_out1 = jnp.concatenate(
        [dense1_p1_conv, c3, dense3_up, dense4_up2, dense5_up3], axis=-1)
    dense_out1 = conv2d(dense_out1, P["dl5"][0], pad=1, act="relu")
    dense_out2 = jnp.concatenate(
        [dense1_p2_conv, dense2_p1_conv, c4, dense4_up1, dense5_up2], axis=-1)
    dense_out2 = conv2d(dense_out2, P["dl5"][1], pad=1, act="relu")
    dense_out3 = jnp.concatenate(
        [dense1_p3_conv, dense2_p2_conv, dense3_p1_conv, c5_, dense5_up1], axis=-1)
    dense_out3 = conv2d(dense_out3, P["dl5"][2], pad=1, act="relu")
    dense_out4 = jnp.concatenate(
        [dense2_p3_conv, dense3_p2_conv, dense4_p_conv, p6], axis=-1)
    dense_out4 = conv2d(dense_out4, P["dl5"][3], pad=1, act="relu")

    sources = [dense_out1, dense_out2, dense_out3, dense_out4]
    for k_idx in range(2, len(P["extras"])):
        _, _, kk, s, pd = EXTRAS_CFG[k_idx]
        x_e = conv2d(x_e, P["extras"][k_idx], stride=s, pad=pd, act="relu")
        if k_idx % 2 == 1:
            sources.append(x_e)
    return sources


if __name__ == "__main__":
    params = init_params(seed=0, num_blocks=(1, 1, 1, 1))
    key = jax.random.PRNGKey(0)
    # Small input consistent with the module: batch=2, RGB, 64x64 (NHWC).
    x = jax.random.normal(key, (2, 64, 64, 3), dtype=f32)
    fwd = jax.jit(forward)
    outs = fwd(params, x)
    outs = jax.block_until_ready(outs)
    assert len(outs) == 7  # 4 dense outputs + 3 extra SSD sources ('512' extras)
    for o in outs:
        assert bool(jnp.all(jnp.isfinite(o)))
    print("KERNEL_OK")
</pallas_src>

<mosaic_0001>
module attributes {stable_mosaic.version = 11 : i64} {
  func.func @_mm_kernel(%arg0: i32, %arg1: i32, %arg2: i32, %arg3: memref<512x256xbf16, #tpu.memory_space<vmem>>, %arg4: memref<256x128xbf16, #tpu.memory_space<vmem>>, %arg5: memref<1x128xf32, #tpu.memory_space<vmem>>, %arg6: memref<1x128xf32, #tpu.memory_space<vmem>>, %arg7: memref<512x128xf32, #tpu.memory_space<vmem>>) attributes {dimension_semantics = [#tpu.dimension_semantics<parallel>, #tpu.dimension_semantics<parallel>, #tpu.dimension_semantics<arbitrary>], iteration_bounds = array<i64: 4, 1, 1>, scalar_prefetch = 0 : i64, scratch_operands = 0 : i64, tpu.core_type = #tpu.core_type<tc>, window_params = [{transform_indices = @transform_0, window_bounds = array<i64: 512, 256>}, {transform_indices = @transform_1, window_bounds = array<i64: 256, 128>}, {transform_indices = @transform_2, window_bounds = array<i64: 1, 128>}, {transform_indices = @transform_3, window_bounds = array<i64: 1, 128>}, {transform_indices = @transform_4, window_bounds = array<i64: 512, 128>}]} {
    %c0 = arith.constant 0 : index
    %c0_0 = arith.constant 0 : index
    %0 = vector.load %arg3[%c0, %c0_0] : memref<512x256xbf16, #tpu.memory_space<vmem>>, vector<512x256xbf16>
    %c0_1 = arith.constant 0 : index
    %c0_2 = arith.constant 0 : index
    %1 = vector.load %arg4[%c0_1, %c0_2] : memref<256x128xbf16, #tpu.memory_space<vmem>>, vector<256x128xbf16>
    %cst = arith.constant dense<0.000000e+00> : vector<512x128xf32>
    %2 = tpu.matmul %0, %1, %cst {dimension_numbers = #tpu.dot_dimension_numbers<[1], [0], [0], [1], [0, 0, 1, 1], [], []>} : vector<512x256xbf16>, vector<256x128xbf16>, vector<512x128xf32> -> vector<512x128xf32>
    %c0_3 = arith.constant 0 : index
    %c0_4 = arith.constant 0 : index
    %3 = vector.load %arg5[%c0_3, %c0_4] : memref<1x128xf32, #tpu.memory_space<vmem>>, vector<1x128xf32>
    %4 = vector.broadcast %3 : vector<1x128xf32> to vector<512x128xf32>
    %5 = arith.mulf %2, %4 : vector<512x128xf32>
    %c0_5 = arith.constant 0 : index
    %c0_6 = arith.constant 0 : index
    %6 = vector.load %arg6[%c0_5, %c0_6] : memref<1x128xf32, #tpu.memory_space<vmem>>, vector<1x128xf32>
    %7 = vector.broadcast %6 : vector<1x128xf32> to vector<512x128xf32>
    %8 = arith.addf %5, %7 : vector<512x128xf32>
    %cst_7 = arith.constant 0.000000e+00 : f32
    %9 = vector.broadcast %cst_7 : f32 to vector<512x128xf32>
    %10 = arith.maximumf %8, %9 : vector<512x128xf32>
    %c0_8 = arith.constant 0 : index
    %c0_9 = arith.constant 0 : index
    %11 = vector.load %arg7[%c0_8, %c0_9] : memref<512x128xf32, #tpu.memory_space<vmem>>, vector<512x128xf32>
    tpu.vector_store %arg7[%c0_8, %c0_9], %10 {strides = array<i32>} : memref<512x128xf32, #tpu.memory_space<vmem>>, vector<512x128xf32>,
    return
  }
  func.func @transform_0(%arg0: i32, %arg1: i32, %arg2: i32) -> (i32, i32) {
    %c0_i32 = arith.constant 0 : i32
    return %arg0, %arg2 : i32, i32
  }
  func.func @transform_1(%arg0: i32, %arg1: i32, %arg2: i32) -> (i32, i32) {
    %c0_i32 = arith.constant 0 : i32
    return %arg2, %arg1 : i32, i32
  }
  func.func @transform_2(%arg0: i32, %arg1: i32, %arg2: i32) -> (i32, i32) {
    %c0_i32 = arith.constant 0 : i32
    %c0_i32_0 = arith.constant 0 : i32
    return %c0_i32, %arg1 : i32, i32
  }
  func.func @transform_3(%arg0: i32, %arg1: i32, %arg2: i32) -> (i32, i32) {
    %c0_i32 = arith.constant 0 : i32
    %c0_i32_0 = arith.constant 0 : i32
    return %c0_i32, %arg1 : i32, i32
  }
  func.func @transform_4(%arg0: i32, %arg1: i32, %arg2: i32) -> (i32, i32) {
    %c0_i32 = arith.constant 0 : i32
    return %arg0, %arg1 : i32, i32
  }
}

</mosaic_0001>

<llo_original>
// kernel: tpu_custom_call.1
$region0: #{tpu_custom_call.1}
  #allocation0 [shape = 'u32[]', space=smem, size = 0x4, offset = 0x4, fixed_abs, tag = 'smem constant byte address 0x4 - core index']
  #allocation1 [shape = 'u32[144,128]{1,0:T(1,128)}', space=vmem, size = 0x12000, scoped, tag = 'internal scratch']
  %s0 = inlined_call_operand.hbm [shape: bf16[2048,256], index: 0, kind: input, shape index: {}]
  %s1 = inlined_call_operand.hbm [shape: bf16[256,128], index: 1, kind: input, shape index: {}]
  %s2 = inlined_call_operand.vmem [shape: f32[1,128], index: 2, kind: input, shape index: {}]
  %s3 = inlined_call_operand.vmem [shape: f32[1,128], index: 3, kind: input, shape index: {}]
  %s4 = inlined_call_operand.hbm [shape: f32[2048,128], index: 4, kind: output, shape index: {}]
  %s5 = sld [smem:[#allocation0]]
  $region57: #{tpu_custom_call.1} parent=0
    _
  %s7 = ssub.s32 1, %s5
  %s8 = scalar_select 0, %s7, %s5
  $region1: #{tpu_custom_call.1} parent=0
    #allocation2 [shape = 'u8[524288]{0}', space=vmem, size = 0x80000, scoped, tag = 'input window, operand 0']
    #allocation3 [shape = 's32[2]{0}', space=sflag, size = 0x8, scoped, tag = 'scoped memory for tpu_custom_call.1']
    #allocation4 [shape = 's32[2]{0}', space=sflag, size = 0x8, scoped, tag = 'scoped memory for tpu_custom_call.1']
    #allocation5 [shape = 'u8[65536]{0}', space=vmem, size = 0x10000, scoped, tag = 'input window, operand 1, single buffered']
    #allocation6 [shape = 's32[1]{0}', space=sflag, size = 0x4, scoped, tag = 'scoped memory for tpu_custom_call.1']
    #allocation7 [shape = 'u8[524288]{0}', space=vmem, size = 0x80000, scoped, tag = 'output window, operand 0']
    %9 = vsyncpa [#allocation3], 0
    %s10 = scalar_lea.sflag [#allocation3], 1
    %11 = vsyncpa %s10, 0
    %12 = vsyncpa [#allocation6], 0
    %13 = vsyncpa [#allocation4], 0
    %s14 = scalar_lea.sflag [#allocation4], 1
    %15 = vsyncpa %s14, 0
    loop: start=0, step=1, limit=6
    $region2: #{tpu_custom_call.1} parent=1 // loop_pre_header
      _
    $region3: #{tpu_custom_call.1} parent=1 // loop_header
      %s17 = sphi 0, %s21
      %p18 = scmp.ge.s32.totalorder %s17, 6
      %s24 = sphi 0, %s43
      %s25 = sphi 0, %s39
      %s26 = sphi 0, %s35
      %s27 = sphi 0, %s24
      %s28 = sphi 0, %s25
      %s29 = sphi 0, %s26
      %s30 = sphi 0, %s27
      %s31 = sphi 0, %s28
      %s32 = sphi 0, %s29
      %s48 = sphi 0, %s50
      %s51 = sphi 0, %s48
      %s52 = sphi 0, %s51
      %s68 = sphi 0, %s52
      %s76 = sphi 0, %s78
      %s79 = sphi 0, %s76
      %s80 = sphi 0, %s79
      %s96 = sphi 0, %s80
      %s102 = sphi 0, %s104
      %s105 = sphi 0, %s102
      %s106 = sphi 0, %s105
      %s122 = sphi 0, %s106
      %s128 = sphi 0, %s130
      %s131 = sphi 0, %s128
      %s132 = sphi 0, %s131
      %s148 = sphi 0, %s132
      %s156 = sphi 0, %s158
      %s159 = sphi 0, %s156
      %s160 = sphi 0, %s159
      %s176 = sphi 0, %s160
    $region4: #{tpu_custom_call.1} parent=1 // loop_header_branch
      %20 = sbr.rel (%p18) target = $region8
    $region5: #{tpu_custom_call.1} parent=1 // loop_body
      %s22 = ssub.s32 %s17, 1
      %s23 = ssub.s32 %s17, 2
      %s33 = sadd.s32 1, %s26
      %p34 = scmp.ge.s32.totalorder %s33, 1
      %s35 = scalar_select %p34, 0, %s33
      %s36 = sadd.s32 1, %s25
      %s37 = scalar_select %p34, %s36, %s25
      %p38 = scmp.ge.s32.totalorder %s37, 1
      %s39 = scalar_select %p38, 0, %s37
      %s40 = sadd.s32 1, %s24
      %s41 = scalar_select %p38, %s40, %s24
      %p42 = scmp.ge.s32.totalorder %s41, 4
      %s43 = scalar_select %p42, 0, %s41
      %s44 = ssub.s32 %s24, %s43
      %s45 = ssub.s32 %s26, %s35
      %s46 = sor.u32 %s44, %s45
      %p47 = scmp.eq.s32.totalorder %s46, 0
      %s49 = sadd.s32 %s48, 1
      %s50 = scalar_select %p47, %s48, %s49
      %p53 = pneg %p47
      %p54 = scmp.eq.s32.totalorder %s17, 3
      %p55 = por %p53, %p54
      %p56 = scmp.ne.s32.totalorder %s48, %s51
      %p57 = scmp.eq.s32.totalorder %s17, 0
      %p58 = por %p56, %p57
      %p59 = scmp.ne.s32.totalorder %s48, %s51
      %p60 = scmp.eq.s32.totalorder %s22, 3
      %p61 = por %p59, %p60
      %p62 = scmp.ne.s32.totalorder %s51, %s52
      %p63 = scmp.eq.s32.totalorder %s22, 0
      %p64 = por %p62, %p63
      %p65 = scmp.ne.s32.totalorder %s51, %s52
      %p66 = scmp.eq.s32.totalorder %s23, 3
      %p67 = por %p65, %p66
      %p69 = scmp.ne.s32.totalorder %s52, %s68
      %p70 = scmp.eq.s32.totalorder %s23, 0
      %p71 = por %p69, %p70
      %s72 = ssub.s32 %s26, %s35
      %s73 = ssub.s32 %s25, %s39
      %s74 = sor.u32 %s72, %s73
      %p75 = scmp.eq.s32.totalorder %s74, 0
      %s77 = sadd.s32 %s76, 1
      %s78 = scalar_select %p75, %s76, %s77
      %p81 = pneg %p75
      %p82 = scmp.eq.s32.totalorder %s17, 3
      %p83 = por %p81, %p82
      %p84 = scmp.ne.s32.totalorder %s76, %s79
      %p85 = scmp.eq.s32.totalorder %s17, 0
      %p86 = por %p84, %p85
      %p87 = scmp.ne.s32.totalorder %s76, %s79
      %p88 = scmp.eq.s32.totalorder %s22, 3
      %p89 = por %p87, %p88
      %p90 = scmp.ne.s32.totalorder %s79, %s80
      %p91 = scmp.eq.s32.totalorder %s22, 0
      %p92 = por %p90, %p91
      %p93 = scmp.ne.s32.totalorder %s79, %s80
      %p94 = scmp.eq.s32.totalorder %s23, 3
      %p95 = por %p93, %p94
      %p97 = scmp.ne.s32.totalorder %s80, %s96
      %p98 = scmp.eq.s32.totalorder %s23, 0
      %p99 = por %p97, %p98
      %s100 = ssub.s32 %s25, %s39
      %p101 = scmp.eq.s32.totalorder %s100, 0
      %s103 = sadd.s32 %s102, 1
      %s104 = scalar_select %p101, %s102, %s103
      %p107 = pneg %p101
      %p108 = scmp.eq.s32.totalorder %s17, 3
      %p109 = por %p107, %p108
      %p110 = scmp.ne.s32.totalorder %s102, %s105
      %p111 = scmp.eq.s32.totalorder %s17, 0
      %p112 = por %p110, %p111
      %p113 = scmp.ne.s32.totalorder %s102, %s105
      %p114 = scmp.eq.s32.totalorder %s22, 3
      %p115 = por %p113, %p114
      %p116 = scmp.ne.s32.totalorder %s105, %s106
      %p117 = scmp.eq.s32.totalorder %s22, 0
      %p118 = por %p116, %p117
      %p119 = scmp.ne.s32.totalorder %s105, %s106
      %p120 = scmp.eq.s32.totalorder %s23, 3
      %p121 = por %p119, %p120
      %p123 = scmp.ne.s32.totalorder %s106, %s122
      %p124 = scmp.eq.s32.totalorder %s23, 0
      %p125 = por %p123, %p124
      %s126 = ssub.s32 %s25, %s39
      %p127 = scmp.eq.s32.totalorder %s126, 0
      %s129 = sadd.s32 %s128, 1
      %s130 = scalar_select %p127, %s128, %s129
      %p133 = pneg %p127
      %p134 = scmp.eq.s32.totalorder %s17, 3
      %p135 = por %p133, %p134
      %p136 = scmp.ne.s32.totalorder %s128, %s131
      %p137 = scmp.eq.s32.totalorder %s17, 0
      %p138 = por %p136, %p137
      %p139 = scmp.ne.s32.totalorder %s128, %s131
      %p140 = scmp.eq.s32.totalorder %s22, 3
      %p141 = por %p139, %p140
      %p142 = scmp.ne.s32.totalorder %s131, %s132
      %p143 = scmp.eq.s32.totalorder %s22, 0
      %p144 = por %p142, %p143
      %p145 = scmp.ne.s32.totalorder %s131, %s132
      %p146 = scmp.eq.s32.totalorder %s23, 3
      %p147 = por %p145, %p146
      %p149 = scmp.ne.s32.totalorder %s132, %s148
      %p150 = scmp.eq.s32.totalorder %s23, 0
      %p151 = por %p149, %p150
      %s152 = ssub.s32 %s24, %s43
      %s153 = ssub.s32 %s25, %s39
      %s154 = sor.u32 %s152, %s153
      %p155 = scmp.eq.s32.totalorder %s154, 0
      %s157 = sadd.s32 %s156, 1
      %s158 = scalar_select %p155, %s156, %s157
      %p161 = pneg %p155
      %p162 = scmp.eq.s32.totalorder %s17, 3
      %p163 = por %p161, %p162
      %p164 = scmp.ne.s32.totalorder %s156, %s159
      %p165 = scmp.eq.s32.totalorder %s17, 0
      %p166 = por %p164, %p165
      %p167 = scmp.ne.s32.totalorder %s156, %s159
      %p168 = scmp.eq.s32.totalorder %s22, 3
      %p169 = por %p167, %p168
      %p170 = scmp.ne.s32.totalorder %s159, %s160
      %p171 = scmp.eq.s32.totalorder %s22, 0
      %p172 = por %p170, %p171
      %p173 = scmp.ne.s32.totalorder %s159, %s160
      %p174 = scmp.eq.s32.totalorder %s23, 3
      %p175 = por %p173, %p174
      %p177 = scmp.ne.s32.totalorder %s160, %s176
      %p178 = scmp.eq.s32.totalorder %s23, 0
      %p179 = por %p177, %p178
      %p180 = scmp.le.s32.totalorder 1, %s17
      %p181 = scmp.lt.s32.totalorder %s17, 5
      %p182 = pnand %p180, %p181
      %p183 = pneg %p182
      // Predicated region
      $region9: #{tpu_custom_call.1} parent=5 // pred_check
        _
      $region10: #{tpu_custom_call.1} parent=5 // pred_check_branch
        %185 = sbr.rel (%p182) target = $region12
      $region11: #{tpu_custom_call.1} parent=5 // pred_region
        %s186 = ssub.s32 %s17, 1
        // Predicated region
        $region13: #{tpu_custom_call.1} parent=11 // pred_check
          %p187 = pneg %p92
        $region14: #{tpu_custom_call.1} parent=11 // pred_check_branch
          %189 = sbr.rel (%p187) target = $region16
        $region15: #{tpu_custom_call.1} parent=11 // pred_region
          %s190 = smul.u32 32, %s29
          %s192 = ssub.s32 2048, 2048
          %193 = vsyncadd [#allocation6], %s192
          %s194 = sadd.s32 %s28, %s190
          %s195 = smul.addr %s194, 64
          %s196 = scalar_lea.hbm %s1, %s195
          %s197 = sshll.u32 [#allocation5], 4
          %s198 = int_to_ptr.vmem [resolvable:$true] %s197
          %203 = dma.hbm_to_vmem [thread:$0]  %s196, 2048, %s198, [#allocation6], 64, 64, 4
        $region16: #{tpu_custom_call.1} parent=11 // pred_fallthru
          _
        // Predicated region
        $region17: #{tpu_custom_call.1} parent=11 // pred_check
          %p204 = pneg %p118
        $region18: #{tpu_custom_call.1} parent=11 // pred_check_branch
          %206 = sbr.rel (%p204) target = $region20
        $region19: #{tpu_custom_call.1} parent=11 // pred_region
          %p207 = scmp.lt.s32.totalorder %s28, 0
          %s208 = scalar_select %p207, %s28, 0
          %s209 = scalar_lea.vmem %s2, %s208
        $region20: #{tpu_custom_call.1} parent=11 // pred_fallthru
          _
        // Predicated region
        $region21: #{tpu_custom_call.1} parent=11 // pred_check
          %p210 = pneg %p144
        $region22: #{tpu_custom_call.1} parent=11 // pred_check_branch
          %212 = sbr.rel (%p210) target = $region24
        $region23: #{tpu_custom_call.1} parent=11 // pred_region
          %p213 = scmp.lt.s32.totalorder %s28, 0
          %s214 = scalar_select %p213, %s28, 0
          %s215 = scalar_lea.vmem %s3, %s214
        $region24: #{tpu_custom_call.1} parent=11 // pred_fallthru
          _
      $region12: #{tpu_custom_call.1} parent=5 // pred_fallthru
        _
      %p216 = scmp.lt.s32.totalorder %s17, 4
      // Predicated region
      $region25: #{tpu_custom_call.1} parent=5 // pred_check
        %p217 = pneg %p216
      $region26: #{tpu_custom_call.1} parent=5 // pred_check_branch
        %219 = sbr.rel (%p217) target = $region28
      $region27: #{tpu_custom_call.1} parent=5 // pred_region
        // Predicated region
        $region29: #{tpu_custom_call.1} parent=27 // pred_check
          %p220 = pneg %p58
        $region30: #{tpu_custom_call.1} parent=27 // pred_check_branch
          %222 = sbr.rel (%p220) target = $region32
        $region31: #{tpu_custom_call.1} parent=27 // pred_region
          %s223 = sand.u32 %s48, 1
          %s224 = scalar_lea.sflag [#allocation3], %s223
          %s225 = sand.u32 %s48, 1
          %s226 = smul.addr %s225, 512
          %s227 = scalar_lea.vmem [#allocation2], %s226
          %s228 = smul.u32 64, %s24
          %s229 = smul.u32 2, %s26
          %s231 = ssub.s32 8192, 8192
          %232 = vsyncadd %s224, %s231
          %s233 = smul.addr %s228, 2
          %s234 = sadd.s32 %s229, %s233
          %s235 = smul.addr %s234, 64
          %s236 = scalar_lea.hbm %s0, %s235
          %s237 = sshll.u32 %s227, 4
          %s238 = int_to_ptr.vmem [resolvable:$true] %s237
          %243 = dma.hbm_to_vmem [thread:$0]  %s236, 8192, %s238, %s224, 128, 128, 8
        $region32: #{tpu_custom_call.1} parent=27 // pred_fallthru
          _
      $region28: #{tpu_custom_call.1} parent=5 // pred_fallthru
        _
      %p244 = scmp.le.s32.totalorder 1, %s17
      %p245 = scmp.lt.s32.totalorder %s17, 5
      %p246 = pnand %p244, %p245
      %p247 = pneg %p246
      // Predicated region
      $region33: #{tpu_custom_call.1} parent=5 // pred_check
        _
      $region34: #{tpu_custom_call.1} parent=5 // pred_check_branch
        %249 = sbr.rel (%p246) target = $region36
      $region35: #{tpu_custom_call.1} parent=5 // pred_region
        %s250 = ssub.s32 %s17, 1
        %s251 = sand.u32 %s51, 1
        %s252 = scalar_lea.sflag [#allocation3], %s251
        %s253 = sand.u32 %s51, 1
        %s254 = smul.addr %s253, 512
        %s255 = scalar_lea.vmem [#allocation2], %s254
        // Predicated region
        $region37: #{tpu_custom_call.1} parent=35 // pred_check
          %p256 = pneg %p64
        $region38: #{tpu_custom_call.1} parent=35 // pred_check_branch
          %258 = sbr.rel (%p256) target = $region40
        $region39: #{tpu_custom_call.1} parent=35 // pred_region
          %259 = dma.done %s252, 8192
        $region40: #{tpu_custom_call.1} parent=35 // pred_fallthru
          _
        // Predicated region
        $region41: #{tpu_custom_call.1} parent=35 // pred_check
          %p260 = pneg %p92
        $region42: #{tpu_custom_call.1} parent=35 // pred_check_branch
          %262 = sbr.rel (%p260) target = $region44
        $region43: #{tpu_custom_call.1} parent=35 // pred_region
          %263 = dma.done [#allocation6], 2048
        $region44: #{tpu_custom_call.1} parent=35 // pred_fallthru
          _
        %s264 = sand.u32 %s51, 1
        %s265 = scalar_lea.sflag [#allocation3], %s264
        %s266 = sand.u32 %s51, 1
        %s267 = smul.addr %s266, 512
        %s268 = scalar_lea.vmem [#allocation2], %s267
        %p269 = pneg %p64
        %p270 = pneg %p61
        %p271 = pneg %p92
        %p272 = pneg %p89
        %p273 = scmp.lt.s32.totalorder %s28, 0
        %s274 = scalar_select %p273, %s28, 0
        %s275 = scalar_lea.vmem %s2, %s274
        %p276 = pneg %p118
        %p277 = pneg %p115
        %p278 = scmp.lt.s32.totalorder %s28, 0
        %s279 = scalar_select %p278, %s28, 0
        %s280 = scalar_lea.vmem %s3, %s279
        %p281 = pneg %p144
        %p282 = pneg %p141
        %p283 = pneg %p172
        %p284 = pneg %p169
        %s285 = sand.u32 %s159, 1
        %s286 = scalar_lea.sflag [#allocation4], %s285
        %s287 = sand.u32 %s159, 1
        %s288 = smul.addr %s287, 512
        %s289 = scalar_lea.vmem [#allocation7], %s288
        %s290 = smul.u32 64, %s27
        %s291 = smul.u32 2, %s29
        %s292 = smul.u32 32, %s29
        %p293 = scmp.lt.s32.totalorder %s28, 0
        %s294 = scalar_select %p293, %s28, 0
        %s295 = scalar_lea.vmem %s2, %s294
        %p296 = scmp.lt.s32.totalorder %s28, 0
        %s297 = scalar_select %p296, %s28, 0
        %s298 = scalar_lea.vmem %s3, %s297
        %s299 = smul.u32 64, %s27
        %v301 = vld [vmem:[%s255] sm:$0xff]
        %v302 = vld [vmem:[%s255 + $0x8] sm:$0xff]
        %v303 = vld [vmem:[%s255 + $0x10] sm:$0xff]
        %v304 = vld [vmem:[%s255 + $0x18] sm:$0xff]
        %v305 = vld [vmem:[%s255 + $0x20] sm:$0xff]
        %v306 = vld [vmem:[%s255 + $0x28] sm:$0xff]
        %v307 = vld [vmem:[%s255 + $0x30] sm:$0xff]
        %v308 = vld [vmem:[%s255 + $0x38] sm:$0xff]
        %v309 = vld [vmem:[%s255 + $0x40] sm:$0xff]
        %v310 = vld [vmem:[%s255 + $0x48] sm:$0xff]
        %v311 = vld [vmem:[%s255 + $0x50] sm:$0xff]
        %v312 = vld [vmem:[%s255 + $0x58] sm:$0xff]
        %v313 = vld [vmem:[%s255 + $0x60] sm:$0xff]
        %v314 = vld [vmem:[%s255 + $0x68] sm:$0xff]
        %v315 = vld [vmem:[%s255 + $0x70] sm:$0xff]
        %v316 = vld [vmem:[%s255 + $0x78] sm:$0xff]
        %v317 = vld [vmem:[%s255 + $0x80] sm:$0xff]
        %v318 = vld [vmem:[%s255 + $0x88] sm:$0xff]
        %v319 = vld [vmem:[%s255 + $0x90] sm:$0xff]
        %v320 = vld [vmem:[%s255 + $0x98] sm:$0xff]
        %v321 = vld [vmem:[%s255 + $0xa0] sm:$0xff]
        %v322 = vld [vmem:[%s255 + $0xa8] sm:$0xff]
        %v323 = vld [vmem:[%s255 + $0xb0] sm:$0xff]
        %v324 = vld [vmem:[%s255 + $0xb8] sm:$0xff]
        %v325 = vld [vmem:[%s255 + $0xc0] sm:$0xff]
        %v326 = vld [vmem:[%s255 + $0xc8] sm:$0xff]
        %v327 = vld [vmem:[%s255 + $0xd0] sm:$0xff]
        %v328 = vld [vmem:[%s255 + $0xd8] sm:$0xff]
        %v329 = vld [vmem:[%s255 + $0xe0] sm:$0xff]
        %v330 = vld [vmem:[%s255 + $0xe8] sm:$0xff]
        %v331 = vld [vmem:[%s255 + $0xf0] sm:$0xff]
        %v332 = vld [vmem:[%s255 + $0xf8] sm:$0xff]
        %v333 = vld [vmem:[%s255 + $0x100] sm:$0xff]
        %v334 = vld [vmem:[%s255 + $0x108] sm:$0xff]
        %v335 = vld [vmem:[%s255 + $0x110] sm:$0xff]
        %v336 = vld [vmem:[%s255 + $0x118] sm:$0xff]
        %v337 = vld [vmem:[%s255 + $0x120] sm:$0xff]
        %v338 = vld [vmem:[%s255 + $0x128] sm:$0xff]
        %v339 = vld [vmem:[%s255 + $0x130] sm:$0xff]
        %v340 = vld [vmem:[%s255 + $0x138] sm:$0xff]
        %v341 = vld [vmem:[%s255 + $0x140] sm:$0xff]
        %v342 = vld [vmem:[%s255 + $0x148] sm:$0xff]
        %v343 = vld [vmem:[%s255 + $0x150] sm:$0xff]
        %v344 = vld [vmem:[%s255 + $0x158] sm:$0xff]
        %v345 = vld [vmem:[%s255 + $0x160] sm:$0xff]
        %v346 = vld [vmem:[%s255 + $0x168] sm:$0xff]
        %v347 = vld [vmem:[%s255 + $0x170] sm:$0xff]
        %v348 = vld [vmem:[%s255 + $0x178] sm:$0xff]
        %v349 = vld [vmem:[%s255 + $0x180] sm:$0xff]
        %v350 = vld [vmem:[%s255 + $0x188] sm:$0xff]
        %v351 = vld [vmem:[%s255 + $0x190] sm:$0xff]
        %v352 = vld [vmem:[%s255 + $0x198] sm:$0xff]
        %v353 = vld [vmem:[%s255 + $0x1a0] sm:$0xff]
        %v354 = vld [vmem:[%s255 + $0x1a8] sm:$0xff]
        %v355 = vld [vmem:[%s255 + $0x1b0] sm:$0xff]
        %v356 = vld [vmem:[%s255 + $0x1b8] sm:$0xff]
        %v357 = vld [vmem:[%s255 + $0x1c0] sm:$0xff]
        %v358 = vld [vmem:[%s255 + $0x1c8] sm:$0xff]
        %v359 = vld [vmem:[%s255 + $0x1d0] sm:$0xff]
        %v360 = vld [vmem:[%s255 + $0x1d8] sm:$0xff]
        %v361 = vld [vmem:[%s255 + $0x1e0] sm:$0xff]
        %v362 = vld [vmem:[%s255 + $0x1e8] sm:$0xff]
        %v363 = vld [vmem:[%s255 + $0x1f0] sm:$0xff]
        %v364 = vld [vmem:[%s255 + $0x1f8] sm:$0xff]
        %v365 = vld [vmem:[#allocation5] sm:$0xf]
        %v366 = vld [vmem:[#allocation5 + $0x4] sm:$0xf]
        %v367 = vld [vmem:[#allocation5 + $0x8] sm:$0xf]
        %v368 = vld [vmem:[#allocation5 + $0xc] sm:$0xf]
        %v369 = vld [vmem:[#allocation5 + $0x10] sm:$0xf]
        %v370 = vld [vmem:[#allocation5 + $0x14] sm:$0xf]
        %v371 = vld [vmem:[#allocation5 + $0x18] sm:$0xf]
        %v372 = vld [vmem:[#allocation5 + $0x1c] sm:$0xf]
        %v373 = vld [vmem:[#allocation5 + $0x20] sm:$0xf]
        %v374 = vld [vmem:[#allocation5 + $0x24] sm:$0xf]
        %v375 = vld [vmem:[#allocation5 + $0x28] sm:$0xf]
        %v376 = vld [vmem:[#allocation5 + $0x2c] sm:$0xf]
        %v377 = vld [vmem:[#allocation5 + $0x30] sm:$0xf]
        %v378 = vld [vmem:[#allocation5 + $0x34] sm:$0xf]
        %v379 = vld [vmem:[#allocation5 + $0x38] sm:$0xf]
        %v380 = vld [vmem:[#allocation5 + $0x3c] sm:$0xf]
        %v381 = vld [vmem:[#allocation5 + $0x40] sm:$0xf]
        %v382 = vld [vmem:[#allocation5 + $0x44] sm:$0xf]
        %v383 = vld [vmem:[#allocation5 + $0x48] sm:$0xf]
        %v384 = vld [vmem:[#allocation5 + $0x4c] sm:$0xf]
        %v385 = vld [vmem:[#allocation5 + $0x50] sm:$0xf]
        %v386 = vld [vmem:[#allocation5 + $0x54] sm:$0xf]
        %v387 = vld [vmem:[#allocation5 + $0x58] sm:$0xf]
        %v388 = vld [vmem:[#allocation5 + $0x5c] sm:$0xf]
        %v389 = vld [vmem:[#allocation5 + $0x60] sm:$0xf]
        %v390 = vld [vmem:[#allocation5 + $0x64] sm:$0xf]
        %v391 = vld [vmem:[#allocation5 + $0x68] sm:$0xf]
        %v392 = vld [vmem:[#allocation5 + $0x6c] sm:$0xf]
        %v393 = vld [vmem:[#allocation5 + $0x70] sm:$0xf]
        %v394 = vld [vmem:[#allocation5 + $0x74] sm:$0xf]
        %v395 = vld [vmem:[#allocation5 + $0x78] sm:$0xf]
        %v396 = vld [vmem:[#allocation5 + $0x7c] sm:$0xf]
        %v461 = vunpack.c.l.b16 %v301
        %v462 = vunpack.c.h.b16 %v301
        %v463 = vunpack.c.l.b16 %v302
        %v464 = vunpack.c.h.b16 %v302
        %v465 = vunpack.c.l.b16 %v303
        %v466 = vunpack.c.h.b16 %v303
        %v467 = vunpack.c.l.b16 %v304
        %v468 = vunpack.c.h.b16 %v304
        %v469 = vunpack.c.l.b16 %v305
        %v470 = vunpack.c.h.b16 %v305
        %v471 = vunpack.c.l.b16 %v306
        %v472 = vunpack.c.h.b16 %v306
        %v473 = vunpack.c.l.b16 %v307
        %v474 = vunpack.c.h.b16 %v307
        %v475 = vunpack.c.l.b16 %v308
        %v476 = vunpack.c.h.b16 %v308
        %v477 = vunpack.c.l.b16 %v309
        %v478 = vunpack.c.h.b16 %v309
        %v479 = vunpack.c.l.b16 %v310
        %v480 = vunpack.c.h.b16 %v310
        %v481 = vunpack.c.l.b16 %v311
        %v482 = vunpack.c.h.b16 %v311
        %v483 = vunpack.c.l.b16 %v312
        %v484 = vunpack.c.h.b16 %v312
        %v485 = vunpack.c.l.b16 %v313
        %v486 = vunpack.c.h.b16 %v313
        %v487 = vunpack.c.l.b16 %v314
        %v488 = vunpack.c.h.b16 %v314
        %v489 = vunpack.c.l.b16 %v315
        %v490 = vunpack.c.h.b16 %v315
        %v491 = vunpack.c.l.b16 %v316
        %v492 = vunpack.c.h.b16 %v316
        %v493 = vunpack.c.l.b16 %v317
        %v494 = vunpack.c.h.b16 %v317
        %v495 = vunpack.c.l.b16 %v318
        %v496 = vunpack.c.h.b16 %v318
        %v497 = vunpack.c.l.b16 %v319
        %v498 = vunpack.c.h.b16 %v319
        %v499 = vunpack.c.l.b16 %v320
        %v500 = vunpack.c.h.b16 %v320
        %v501 = vunpack.c.l.b16 %v321
        %v502 = vunpack.c.h.b16 %v321
        %v503 = vunpack.c.l.b16 %v322
        %v504 = vunpack.c.h.b16 %v322
        %v505 = vunpack.c.l.b16 %v323
        %v506 = vunpack.c.h.b16 %v323
        %v507 = vunpack.c.l.b16 %v324
        %v508 = vunpack.c.h.b16 %v324
        %v509 = vunpack.c.l.b16 %v325
        %v510 = vunpack.c.h.b16 %v325
        %v511 = vunpack.c.l.b16 %v326
        %v512 = vunpack.c.h.b16 %v326
        %v513 = vunpack.c.l.b16 %v327
        %v514 = vunpack.c.h.b16 %v327
        %v515 = vunpack.c.l.b16 %v328
        %v516 = vunpack.c.h.b16 %v328
        %v517 = vunpack.c.l.b16 %v329
        %v518 = vunpack.c.h.b16 %v329
        %v519 = vunpack.c.l.b16 %v330
        %v520 = vunpack.c.h.b16 %v330
        %v521 = vunpack.c.l.b16 %v331
        %v522 = vunpack.c.h.b16 %v331
        %v523 = vunpack.c.l.b16 %v332
        %v524 = vunpack.c.h.b16 %v332
        %v525 = vunpack.c.l.b16 %v333
        %v526 = vunpack.c.h.b16 %v333
        %v527 = vunpack.c.l.b16 %v334
        %v528 = vunpack.c.h.b16 %v334
        %v529 = vunpack.c.l.b16 %v335
        %v530 = vunpack.c.h.b16 %v335
        %v531 = vunpack.c.l.b16 %v336
        %v532 = vunpack.c.h.b16 %v336
        %v533 = vunpack.c.l.b16 %v337
        %v534 = vunpack.c.h.b16 %v337
        %v535 = vunpack.c.l.b16 %v338
        %v536 = vunpack.c.h.b16 %v338
        %v537 = vunpack.c.l.b16 %v339
        %v538 = vunpack.c.h.b16 %v339
        %v539 = vunpack.c.l.b16 %v340
        %v540 = vunpack.c.h.b16 %v340
        %v541 = vunpack.c.l.b16 %v341
        %v542 = vunpack.c.h.b16 %v341
        %v543 = vunpack.c.l.b16 %v342
        %v544 = vunpack.c.h.b16 %v342
        %v545 = vunpack.c.l.b16 %v343
        %v546 = vunpack.c.h.b16 %v343
        %v547 = vunpack.c.l.b16 %v344
        %v548 = vunpack.c.h.b16 %v344
        %v549 = vunpack.c.l.b16 %v345
        %v550 = vunpack.c.h.b16 %v345
        %v551 = vunpack.c.l.b16 %v346
        %v552 = vunpack.c.h.b16 %v346
        %v553 = vunpack.c.l.b16 %v347
        %v554 = vunpack.c.h.b16 %v347
        %v555 = vunpack.c.l.b16 %v348
        %v556 = vunpack.c.h.b16 %v348
        %v557 = vunpack.c.l.b16 %v349
        %v558 = vunpack.c.h.b16 %v349
        %v559 = vunpack.c.l.b16 %v350
        %v560 = vunpack.c.h.b16 %v350
        %v561 = vunpack.c.l.b16 %v351
        %v562 = vunpack.c.h.b16 %v351
        %v563 = vunpack.c.l.b16 %v352
        %v564 = vunpack.c.h.b16 %v352
        %v565 = vunpack.c.l.b16 %v353
        %v566 = vunpack.c.h.b16 %v353
        %v567 = vunpack.c.l.b16 %v354
        %v568 = vunpack.c.h.b16 %v354
        %v569 = vunpack.c.l.b16 %v355
        %v570 = vunpack.c.h.b16 %v355
        %v571 = vunpack.c.l.b16 %v356
        %v572 = vunpack.c.h.b16 %v356
        %v573 = vunpack.c.l.b16 %v357
        %v574 = vunpack.c.h.b16 %v357
        %v575 = vunpack.c.l.b16 %v358
        %v576 = vunpack.c.h.b16 %v358
        %v577 = vunpack.c.l.b16 %v359
        %v578 = vunpack.c.h.b16 %v359
        %v579 = vunpack.c.l.b16 %v360
        %v580 = vunpack.c.h.b16 %v360
        %v581 = vunpack.c.l.b16 %v361
        %v582 = vunpack.c.h.b16 %v361
        %v583 = vunpack.c.l.b16 %v362
        %v584 = vunpack.c.h.b16 %v362
        %v585 = vunpack.c.l.b16 %v363
        %v586 = vunpack.c.h.b16 %v363
        %v587 = vunpack.c.l.b16 %v364
        %v588 = vunpack.c.h.b16 %v364
        %v589 = vpack.c.b16 %v463, %v461
        %v590 = vpack.c.b16 %v464, %v462
        %v591 = vpack.c.b16 %v467, %v465
        %v592 = vpack.c.b16 %v468, %v466
        %v593 = vpack.c.b16 %v471, %v469
        %v594 = vpack.c.b16 %v472, %v470
        %v595 = vpack.c.b16 %v475, %v473
        %v596 = vpack.c.b16 %v476, %v474
        %v597 = vpack.c.b16 %v479, %v477
        %v598 = vpack.c.b16 %v480, %v478
        %v599 = vpack.c.b16 %v483, %v481
        %v600 = vpack.c.b16 %v484, %v482
        %v601 = vpack.c.b16 %v487, %v485
        %v602 = vpack.c.b16 %v488, %v486
        %v603 = vpack.c.b16 %v491, %v489
        %v604 = vpack.c.b16 %v492, %v490
        %v605 = vpack.c.b16 %v495, %v493
        %v606 = vpack.c.b16 %v496, %v494
        %v607 = vpack.c.b16 %v499, %v497
        %v608 = vpack.c.b16 %v500, %v498
        %v609 = vpack.c.b16 %v503, %v501
        %v610 = vpack.c.b16 %v504, %v502
        %v611 = vpack.c.b16 %v507, %v505
        %v612 = vpack.c.b16 %v508, %v506
        %v613 = vpack.c.b16 %v511, %v509
        %v614 = vpack.c.b16 %v512, %v510
        %v615 = vpack.c.b16 %v515, %v513
        %v616 = vpack.c.b16 %v516, %v514
        %v617 = vpack.c.b16 %v519, %v517
        %v618 = vpack.c.b16 %v520, %v518
        %v619 = vpack.c.b16 %v523, %v521
        %v620 = vpack.c.b16 %v524, %v522
        %v621 = vpack.c.b16 %v527, %v525
        %v622 = vpack.c.b16 %v528, %v526
        %v623 = vpack.c.b16 %v531, %v529
        %v624 = vpack.c.b16 %v532, %v530
        %v625 = vpack.c.b16 %v535, %v533
        %v626 = vpack.c.b16 %v536, %v534
        %v627 = vpack.c.b16 %v539, %v537
        %v628 = vpack.c.b16 %v540, %v538
        %v629 = vpack.c.b16 %v543, %v541
        %v630 = vpack.c.b16 %v544, %v542
        %v631 = vpack.c.b16 %v547, %v545
        %v632 = vpack.c.b16 %v548, %v546
        %v633 = vpack.c.b16 %v551, %v549
        %v634 = vpack.c.b16 %v552, %v550
        %v635 = vpack.c.b16 %v555, %v553
        %v636 = vpack.c.b16 %v556, %v554
        %v637 = vpack.c.b16 %v559, %v557
        %v638 = vpack.c.b16 %v560, %v558
        %v639 = vpack.c.b16 %v563, %v561
        %v640 = vpack.c.b16 %v564, %v562
        %v641 = vpack.c.b16 %v567, %v565
        %v642 = vpack.c.b16 %v568, %v566
        %v643 = vpack.c.b16 %v571, %v569
        %v644 = vpack.c.b16 %v572, %v570
        %v645 = vpack.c.b16 %v575, %v573
        %v646 = vpack.c.b16 %v576, %v574
        %v647 = vpack.c.b16 %v579, %v577
        %v648 = vpack.c.b16 %v580, %v578
        %v649 = vpack.c.b16 %v583, %v581
        %v650 = vpack.c.b16 %v584, %v582
        %v651 = vpack.c.b16 %v587, %v585
        %v652 = vpack.c.b16 %v588, %v586
        %v749 = vunpack.c.l.b16 %v365
        %v750 = vunpack.c.l.b16 %v366
        %v751 = vunpack.c.l.b16 %v367
        %v752 = vunpack.c.l.b16 %v368
        %v753 = vunpack.c.l.b16 %v369
        %v754 = vunpack.c.l.b16 %v370
        %v755 = vunpack.c.l.b16 %v371
        %v756 = vunpack.c.l.b16 %v372
        %v757 = vunpack.c.l.b16 %v373
        %v758 = vunpack.c.l.b16 %v374
        %v759 = vunpack.c.l.b16 %v375
        %v760 = vunpack.c.l.b16 %v376
        %v761 = vunpack.c.l.b16 %v377
        %v762 = vunpack.c.l.b16 %v378
        %v763 = vunpack.c.l.b16 %v379
        %v764 = vunpack.c.l.b16 %v380
        %v765 = vunpack.c.l.b16 %v381
        %v766 = vunpack.c.l.b16 %v382
        %v767 = vunpack.c.l.b16 %v383
        %v768 = vunpack.c.l.b16 %v384
        %v769 = vunpack.c.l.b16 %v385
        %v770 = vunpack.c.l.b16 %v386
        %v771 = vunpack.c.l.b16 %v387
        %v772 = vunpack.c.l.b16 %v388
        %v773 = vunpack.c.l.b16 %v389
        %v774 = vunpack.c.l.b16 %v390
        %v775 = vunpack.c.l.b16 %v391
        %v776 = vunpack.c.l.b16 %v392
        %v777 = vunpack.c.l.b16 %v393
        %v778 = vunpack.c.l.b16 %v394
        %v779 = vunpack.c.l.b16 %v395
        %v780 = vunpack.c.l.b16 %v396
        %v781 = vpack.c.b16 %v750, %v749
        %v782 = vpack.c.b16 %v752, %v751
        %v783 = vpack.c.b16 %v754, %v753
        %v784 = vpack.c.b16 %v756, %v755
        %v785 = vpack.c.b16 %v758, %v757
        %v786 = vpack.c.b16 %v760, %v759
        %v787 = vpack.c.b16 %v762, %v761
        %v788 = vpack.c.b16 %v764, %v763
        %v789 = vpack.c.b16 %v766, %v765
        %v790 = vpack.c.b16 %v768, %v767
        %v791 = vpack.c.b16 %v770, %v769
        %v792 = vpack.c.b16 %v772, %v771
        %v793 = vpack.c.b16 %v774, %v773
        %v794 = vpack.c.b16 %v776, %v775
        %v795 = vpack.c.b16 %v778, %v777
        %v796 = vpack.c.b16 %v780, %v779
        %813 = vmatprep.subr.bf16.mxu0 0
        %814 = vmatpush1.bf16.msra.mxu0 %v788
        %815 = vmatprep.subr.bf16.mxu0 0
        %816 = vmatpush1.bf16.msra.mxu0 %v787
        %817 = vmatprep.subr.bf16.mxu0 0
        %818 = vmatpush1.bf16.msra.mxu0 %v786
        %819 = vmatprep.subr.bf16.mxu0 0
        %820 = vmatpush1.bf16.msra.mxu0 %v785
        %821 = vmatprep.subr.bf16.mxu0 0
        %822 = vmatpush1.bf16.msra.mxu0 %v784
        %823 = vmatprep.subr.bf16.mxu0 0
        %824 = vmatpush1.bf16.msra.mxu0 %v783
        %825 = vmatprep.subr.bf16.mxu0 0
        %826 = vmatpush1.bf16.msra.mxu0 %v782
        %827 = vmatprep.subr.bf16.mxu0 0
        %828 = vmatpush1.bf16.msra.mxu0 %v781
        %829 = vmatprep.subr.bf16.mxu0 0
        %830 = vmatpush2.bf16.msra.mxu0 %v796
        %831 = vmatprep.subr.bf16.mxu0 0
        %832 = vmatpush2.bf16.msra.mxu0 %v795
        %833 = vmatprep.subr.bf16.mxu0 0
        %834 = vmatpush2.bf16.msra.mxu0 %v794
        %835 = vmatprep.subr.bf16.mxu0 0
        %836 = vmatpush2.bf16.msra.mxu0 %v793
        %837 = vmatprep.subr.bf16.mxu0 0
        %838 = vmatpush2.bf16.msra.mxu0 %v792
        %839 = vmatprep.subr.bf16.mxu0 0
        %840 = vmatpush2.bf16.msra.mxu0 %v791
        %841 = vmatprep.subr.bf16.mxu0 0
        %842 = vmatpush2.bf16.msra.mxu0 %v790
        %843 = vmatprep.subr.bf16.mxu0 0
        %844 = vmatpush2.bf16.msra.mxu0 %v789
        %845 = vmatprep.mubr.bf16.mxu0 %v590
        %846 = vmatmul.mubr.bf16.gmra.mxu0 %v589
        %v847 = vpop.f32.mrf.mxu0
        %v848 = vadd.f32 0.0, %v847
        %v849 = vpop.f32.mrf.mxu0
        %v850 = vpop.f32.mrf.mxu0
        %v851 = vadd.f32 0.0, %v850
        %v852 = vpop.f32.mrf.mxu0
        %853 = vmatprep.mubr.bf16.mxu0 %v592
        %854 = vmatmul.mubr.bf16.gmra.mxu0 %v591
        %v855 = vpop.f32.mrf.mxu0
        %v856 = vadd.f32 0.0, %v855
        %v857 = vpop.f32.mrf.mxu0
        %v858 = vpop.f32.mrf.mxu0
        %v859 = vadd.f32 0.0, %v858
        %v860 = vpop.f32.mrf.mxu0
        %861 = vmatprep.mubr.bf16.mxu0 %v594
        %862 = vmatmul.mubr.bf16.gmra.mxu0 %v593
        %v863 = vpop.f32.mrf.mxu0
        %v864 = vadd.f32 0.0, %v863
        %v865 = vpop.f32.mrf.mxu0
        %v866 = vpop.f32.mrf.mxu0
        %v867 = vadd.f32 0.0, %v866
        %v868 = vpop.f32.mrf.mxu0
        %869 = vmatprep.mubr.bf16.mxu0 %v596
        %870 = vmatmul.mubr.bf16.gmra.mxu0 %v595
        %v871 = vpop.f32.mrf.mxu0
        %v872 = vadd.f32 0.0, %v871
        %v873 = vpop.f32.mrf.mxu0
        %v874 = vpop.f32.mrf.mxu0
        %v875 = vadd.f32 0.0, %v874
        %v876 = vpop.f32.mrf.mxu0
        %877 = vmatprep.mubr.bf16.mxu0 %v598
        %878 = vmatmul.mubr.bf16.gmra.mxu0 %v597
        %v879 = vpop.f32.mrf.mxu0
        %v880 = vadd.f32 0.0, %v879
        %v881 = vpop.f32.mrf.mxu0
        %v882 = vpop.f32.mrf.mxu0
        %v883 = vadd.f32 0.0, %v882
        %v884 = vpop.f32.mrf.mxu0
        %885 = vmatprep.mubr.bf16.mxu0 %v600
        %886 = vmatmul.mubr.bf16.gmra.mxu0 %v599
        %v887 = vpop.f32.mrf.mxu0
        %v888 = vadd.f32 0.0, %v887
        %v889 = vpop.f32.mrf.mxu0
        %v890 = vpop.f32.mrf.mxu0
        %v891 = vadd.f32 0.0, %v890
        %v892 = vpop.f32.mrf.mxu0
        %893 = vmatprep.mubr.bf16.mxu0 %v602
        %894 = vmatmul.mubr.bf16.gmra.mxu0 %v601
        %v895 = vpop.f32.mrf.mxu0
        %v896 = vadd.f32 0.0, %v895
        %v897 = vpop.f32.mrf.mxu0
        %v898 = vpop.f32.mrf.mxu0
        %v899 = vadd.f32 0.0, %v898
        %v900 = vpop.f32.mrf.mxu0
        %901 = vmatprep.mubr.bf16.mxu0 %v604
        %902 = vmatmul.mubr.bf16.gmra.mxu0 %v603
        %v903 = vpop.f32.mrf.mxu0
        %v904 = vadd.f32 0.0, %v903
        %v905 = vpop.f32.mrf.mxu0
        %v906 = vpop.f32.mrf.mxu0
        %v907 = vadd.f32 0.0, %v906
        %v908 = vpop.f32.mrf.mxu0
        %909 = vmatprep.mubr.bf16.mxu0 %v606
        %910 = vmatmul.mubr.bf16.gmra.mxu0 %v605
        %v911 = vpop.f32.mrf.mxu0
        %v912 = vadd.f32 0.0, %v911
        %v913 = vpop.f32.mrf.mxu0
        %v914 = vpop.f32.mrf.mxu0
        %v915 = vadd.f32 0.0, %v914
        %v916 = vpop.f32.mrf.mxu0
        %917 = vmatprep.mubr.bf16.mxu0 %v608
        %918 = vmatmul.mubr.bf16.gmra.mxu0 %v607
        %v919 = vpop.f32.mrf.mxu0
        %v920 = vadd.f32 0.0, %v919
        %v921 = vpop.f32.mrf.mxu0
        %v922 = vpop.f32.mrf.mxu0
        %v923 = vadd.f32 0.0, %v922
        %v924 = vpop.f32.mrf.mxu0
        %925 = vmatprep.mubr.bf16.mxu0 %v610
        %926 = vmatmul.mubr.bf16.gmra.mxu0 %v609
        %v927 = vpop.f32.mrf.mxu0
        %v928 = vadd.f32 0.0, %v927
        %v929 = vpop.f32.mrf.mxu0
        %v930 = vpop.f32.mrf.mxu0
        %v931 = vadd.f32 0.0, %v930
        %v932 = vpop.f32.mrf.mxu0
        %933 = vmatprep.mubr.bf16.mxu0 %v612
        %934 = vmatmul.mubr.bf16.gmra.mxu0 %v611
        %v935 = vpop.f32.mrf.mxu0
        %v936 = vadd.f32 0.0, %v935
        %v937 = vpop.f32.mrf.mxu0
        %v938 = vpop.f32.mrf.mxu0
        %v939 = vadd.f32 0.0, %v938
        %v940 = vpop.f32.mrf.mxu0
        %941 = vmatprep.mubr.bf16.mxu0 %v614
        %942 = vmatmul.mubr.bf16.gmra.mxu0 %v613
        %v943 = vpop.f32.mrf.mxu0
        %v944 = vadd.f32 0.0, %v943
        %v945 = vpop.f32.mrf.mxu0
        %v946 = vpop.f32.mrf.mxu0
        %v947 = vadd.f32 0.0, %v946
        %v948 = vpop.f32.mrf.mxu0
        %949 = vmatprep.mubr.bf16.mxu0 %v616
        %950 = vmatmul.mubr.bf16.gmra.mxu0 %v615
        %v951 = vpop.f32.mrf.mxu0
        %v952 = vadd.f32 0.0, %v951
        %v953 = vpop.f32.mrf.mxu0
        %v954 = vpop.f32.mrf.mxu0
        %v955 = vadd.f32 0.0, %v954
        %v956 = vpop.f32.mrf.mxu0
        %957 = vmatprep.mubr.bf16.mxu0 %v618
        %958 = vmatmul.mubr.bf16.gmra.mxu0 %v617
        %v959 = vpop.f32.mrf.mxu0
        %v960 = vadd.f32 0.0, %v959
        %v961 = vpop.f32.mrf.mxu0
        %v962 = vpop.f32.mrf.mxu0
        %v963 = vadd.f32 0.0, %v962
        %v964 = vpop.f32.mrf.mxu0
        %965 = vmatprep.mubr.bf16.mxu0 %v620
        %966 = vmatmul.mubr.bf16.gmra.mxu0 %v619
        %v967 = vpop.f32.mrf.mxu0
        %v968 = vadd.f32 0.0, %v967
        %v969 = vpop.f32.mrf.mxu0
        %v970 = vpop.f32.mrf.mxu0
        %v971 = vadd.f32 0.0, %v970
        %v972 = vpop.f32.mrf.mxu0
        %973 = vmatprep.mubr.bf16.mxu0 %v622
        %974 = vmatmul.mubr.bf16.gmra.mxu0 %v621
        %v975 = vpop.f32.mrf.mxu0
        %v976 = vadd.f32 0.0, %v975
        %v977 = vpop.f32.mrf.mxu0
        %v978 = vpop.f32.mrf.mxu0
        %v979 = vadd.f32 0.0, %v978
        %v980 = vpop.f32.mrf.mxu0
        %981 = vmatprep.mubr.bf16.mxu0 %v624
        %982 = vmatmul.mubr.bf16.gmra.mxu0 %v623
        %v983 = vpop.f32.mrf.mxu0
        %v984 = vadd.f32 0.0, %v983
        %v985 = vpop.f32.mrf.mxu0
        %v986 = vpop.f32.mrf.mxu0
        %v987 = vadd.f32 0.0, %v986
        %v988 = vpop.f32.mrf.mxu0
        %989 = vmatprep.mubr.bf16.mxu0 %v626
        %990 = vmatmul.mubr.bf16.gmra.mxu0 %v625
        %v991 = vpop.f32.mrf.mxu0
        %v992 = vadd.f32 0.0, %v991
        %v993 = vpop.f32.mrf.mxu0
        %v994 = vpop.f32.mrf.mxu0
        %v995 = vadd.f32 0.0, %v994
        %v996 = vpop.f32.mrf.mxu0
        %997 = vmatprep.mubr.bf16.mxu0 %v628
        %998 = vmatmul.mubr.bf16.gmra.mxu0 %v627
        %v999 = vpop.f32.mrf.mxu0
        %v1000 = vadd.f32 0.0, %v999
        %v1001 = vpop.f32.mrf.mxu0
        %v1002 = vpop.f32.mrf.mxu0
        %v1003 = vadd.f32 0.0, %v1002
        %v1004 = vpop.f32.mrf.mxu0
        %1005 = vmatprep.mubr.bf16.mxu0 %v630
        %1006 = vmatmul.mubr.bf16.gmra.mxu0 %v629
        %v1007 = vpop.f32.mrf.mxu0
        %v1008 = vadd.f32 0.0, %v1007
        %v1009 = vpop.f32.mrf.mxu0
        %v1010 = vpop.f32.mrf.mxu0
        %v1011 = vadd.f32 0.0, %v1010
        %v1012 = vpop.f32.mrf.mxu0
        %1013 = vmatprep.mubr.bf16.mxu0 %v632
        %1014 = vmatmul.mubr.bf16.gmra.mxu0 %v631
        %v1015 = vpop.f32.mrf.mxu0
        %v1016 = vadd.f32 0.0, %v1015
        %v1017 = vpop.f32.mrf.mxu0
        %v1018 = vpop.f32.mrf.mxu0
        %v1019 = vadd.f32 0.0, %v1018
        %v1020 = vpop.f32.mrf.mxu0
        %1021 = vmatprep.mubr.bf16.mxu0 %v634
        %1022 = vmatmul.mubr.bf16.gmra.mxu0 %v633
        %v1023 = vpop.f32.mrf.mxu0
        %v1024 = vadd.f32 0.0, %v1023
        %v1025 = vpop.f32.mrf.mxu0
        %v1026 = vpop.f32.mrf.mxu0
        %v1027 = vadd.f32 0.0, %v1026
        %v1028 = vpop.f32.mrf.mxu0
        %1029 = vmatprep.mubr.bf16.mxu0 %v636
        %1030 = vmatmul.mubr.bf16.gmra.mxu0 %v635
        %v1031 = vpop.f32.mrf.mxu0
        %v1032 = vadd.f32 0.0, %v1031
        %v1033 = vpop.f32.mrf.mxu0
        %v1034 = vpop.f32.mrf.mxu0
        %v1035 = vadd.f32 0.0, %v1034
        %v1036 = vpop.f32.mrf.mxu0
        %1037 = vmatprep.mubr.bf16.mxu0 %v638
        %1038 = vmatmul.mubr.bf16.gmra.mxu0 %v637
        %v1039 = vpop.f32.mrf.mxu0
        %v1040 = vadd.f32 0.0, %v1039
        %v1041 = vpop.f32.mrf.mxu0
        %v1042 = vpop.f32.mrf.mxu0
        %v1043 = vadd.f32 0.0, %v1042
        %v1044 = vpop.f32.mrf.mxu0
        %1045 = vmatprep.mubr.bf16.mxu0 %v640
        %1046 = vmatmul.mubr.bf16.gmra.mxu0 %v639
        %v1047 = vpop.f32.mrf.mxu0
        %v1048 = vadd.f32 0.0, %v1047
        %v1049 = vpop.f32.mrf.mxu0
        %v1050 = vpop.f32.mrf.mxu0
        %v1051 = vadd.f32 0.0, %v1050
        %v1052 = vpop.f32.mrf.mxu0
        %1053 = vmatprep.mubr.bf16.mxu0 %v642
        %1054 = vmatmul.mubr.bf16.gmra.mxu0 %v641
        %v1055 = vpop.f32.mrf.mxu0
        %v1056 = vadd.f32 0.0, %v1055
        %v1057 = vpop.f32.mrf.mxu0
        %v1058 = vpop.f32.mrf.mxu0
        %v1059 = vadd.f32 0.0, %v1058
        %v1060 = vpop.f32.mrf.mxu0
        %1061 = vmatprep.mubr.bf16.mxu0 %v644
        %1062 = vmatmul.mubr.bf16.gmra.mxu0 %v643
        %v1063 = vpop.f32.mrf.mxu0
        %v1064 = vadd.f32 0.0, %v1063
        %v1065 = vpop.f32.mrf.mxu0
        %v1066 = vpop.f32.mrf.mxu0
        %v1067 = vadd.f32 0.0, %v1066
        %v1068 = vpop.f32.mrf.mxu0
        %1069 = vmatprep.mubr.bf16.mxu0 %v646
        %1070 = vmatmul.mubr.bf16.gmra.mxu0 %v645
        %v1071 = vpop.f32.mrf.mxu0
        %v1072 = vadd.f32 0.0, %v1071
        %v1073 = vpop.f32.mrf.mxu0
        %v1074 = vpop.f32.mrf.mxu0
        %v1075 = vadd.f32 0.0, %v1074
        %v1076 = vpop.f32.mrf.mxu0
        %1077 = vmatprep.mubr.bf16.mxu0 %v648
        %1078 = vmatmul.mubr.bf16.gmra.mxu0 %v647
        %v1079 = vpop.f32.mrf.mxu0
        %v1080 = vadd.f32 0.0, %v1079
        %v1081 = vpop.f32.mrf.mxu0
        %v1082 = vpop.f32.mrf.mxu0
        %v1083 = vadd.f32 0.0, %v1082
        %v1084 = vpop.f32.mrf.mxu0
        %1085 = vmatprep.mubr.bf16.mxu0 %v650
        %1086 = vmatmul.mubr.bf16.gmra.mxu0 %v649
        %v1087 = vpop.f32.mrf.mxu0
        %v1088 = vadd.f32 0.0, %v1087
        %v1089 = vpop.f32.mrf.mxu0
        %v1090 = vpop.f32.mrf.mxu0
        %v1091 = vadd.f32 0.0, %v1090
        %v1092 = vpop.f32.mrf.mxu0
        %1093 = vmatprep.mubr.bf16.mxu0 %v652
        %1094 = vmatmul.mubr.bf16.gmra.mxu0 %v651
        %v1095 = vpop.f32.mrf.mxu0
        %v1096 = vadd.f32 0.0, %v1095
        %v1097 = vpop.f32.mrf.mxu0
        %v1098 = vpop.f32.mrf.mxu0
        %v1099 = vadd.f32 0.0, %v1098
        %v1100 = vpop.f32.mrf.mxu0
        %1101 = vdwg.mxu0
        %v1102 = vld [vmem:[%s295] sm:$0x1]
        %v1104 = vlaneseq
        %v1105 = vshrl.u32 %v1104, 7
        %v1106 = vsub.s32 0, %v1105
        %v1107 = vrot.slane %v1102, %v1106
        %v1109 = vmul.f32 %v848, %v1107
        %v1110 = vmul.f32 %v851, %v1107
        %v1111 = vmul.f32 %v856, %v1107
        %v1112 = vmul.f32 %v859, %v1107
        %v1113 = vmul.f32 %v864, %v1107
        %v1114 = vmul.f32 %v867, %v1107
        %v1115 = vmul.f32 %v872, %v1107
        %v1116 = vmul.f32 %v875, %v1107
        %v1117 = vmul.f32 %v880, %v1107
        %v1118 = vmul.f32 %v883, %v1107
        %v1119 = vmul.f32 %v888, %v1107
        %v1120 = vmul.f32 %v891, %v1107
        %v1121 = vmul.f32 %v896, %v1107
        %v1122 = vmul.f32 %v899, %v1107
        %v1123 = vmul.f32 %v904, %v1107
        %v1124 = vmul.f32 %v907, %v1107
        %v1125 = vmul.f32 %v912, %v1107
        %v1126 = vmul.f32 %v915, %v1107
        %v1127 = vmul.f32 %v920, %v1107
        %v1128 = vmul.f32 %v923, %v1107
        %v1129 = vmul.f32 %v928, %v1107
        %v1130 = vmul.f32 %v931, %v1107
        %v1131 = vmul.f32 %v936, %v1107
        %v1132 = vmul.f32 %v939, %v1107
        %v1133 = vmul.f32 %v944, %v1107
        %v1134 = vmul.f32 %v947, %v1107
        %v1135 = vmul.f32 %v952, %v1107
        %v1136 = vmul.f32 %v955, %v1107
        %v1137 = vmul.f32 %v960, %v1107
        %v1138 = vmul.f32 %v963, %v1107
        %v1139 = vmul.f32 %v968, %v1107
        %v1140 = vmul.f32 %v971, %v1107
        %v1141 = vmul.f32 %v976, %v1107
        %v1142 = vmul.f32 %v979, %v1107
        %v1143 = vmul.f32 %v984, %v1107
        %v1144 = vmul.f32 %v987, %v1107
        %v1145 = vmul.f32 %v992, %v1107
        %v1146 = vmul.f32 %v995, %v1107
        %v1147 = vmul.f32 %v1000, %v1107
        %v1148 = vmul.f32 %v1003, %v1107
        %v1149 = vmul.f32 %v1008, %v1107
        %v1150 = vmul.f32 %v1011, %v1107
        %v1151 = vmul.f32 %v1016, %v1107
        %v1152 = vmul.f32 %v1019, %v1107
        %v1153 = vmul.f32 %v1024, %v1107
        %v1154 = vmul.f32 %v1027, %v1107
        %v1155 = vmul.f32 %v1032, %v1107
        %v1156 = vmul.f32 %v1035, %v1107
        %v1157 = vmul.f32 %v1040, %v1107
        %v1158 = vmul.f32 %v1043, %v1107
        %v1159 = vmul.f32 %v1048, %v1107
        %v1160 = vmul.f32 %v1051, %v1107
        %v1161 = vmul.f32 %v1056, %v1107
        %v1162 = vmul.f32 %v1059, %v1107
        %v1163 = vmul.f32 %v1064, %v1107
        %v1164 = vmul.f32 %v1067, %v1107
        %v1165 = vmul.f32 %v1072, %v1107
        %v1166 = vmul.f32 %v1075, %v1107
        %v1167 = vmul.f32 %v1080, %v1107
        %v1168 = vmul.f32 %v1083, %v1107
        %v1169 = vmul.f32 %v1088, %v1107
        %v1170 = vmul.f32 %v1091, %v1107
        %v1171 = vmul.f32 %v1096, %v1107
        %v1172 = vmul.f32 %v1099, %v1107
        %v1173 = vld [vmem:[%s298] sm:$0x1]
        %v1175 = vlaneseq
        %v1176 = vshrl.u32 %v1175, 7
        %v1177 = vsub.s32 0, %v1176
        %v1178 = vrot.slane %v1173, %v1177
        %v1180 = vadd.f32 %v1109, %v1178
        %v1181 = vadd.f32 %v1110, %v1178
        %v1182 = vadd.f32 %v1111, %v1178
        %v1183 = vadd.f32 %v1112, %v1178
        %v1184 = vadd.f32 %v1113, %v1178
        %v1185 = vadd.f32 %v1114, %v1178
        %v1186 = vadd.f32 %v1115, %v1178
        %v1187 = vadd.f32 %v1116, %v1178
        %v1188 = vadd.f32 %v1117, %v1178
        %v1189 = vadd.f32 %v1118, %v1178
        %v1190 = vadd.f32 %v1119, %v1178
        %v1191 = vadd.f32 %v1120, %v1178
        %v1192 = vadd.f32 %v1121, %v1178
        %v1193 = vadd.f32 %v1122, %v1178
        %v1194 = vadd.f32 %v1123, %v1178
        %v1195 = vadd.f32 %v1124, %v1178
        %v1196 = vadd.f32 %v1125, %v1178
        %v1197 = vadd.f32 %v1126, %v1178
        %v1198 = vadd.f32 %v1127, %v1178
        %v1199 = vadd.f32 %v1128, %v1178
        %v1200 = vadd.f32 %v1129, %v1178
        %v1201 = vadd.f32 %v1130, %v1178
        %v1202 = vadd.f32 %v1131, %v1178
        %v1203 = vadd.f32 %v1132, %v1178
        %v1204 = vadd.f32 %v1133, %v1178
        %v1205 = vadd.f32 %v1134, %v1178
        %v1206 = vadd.f32 %v1135, %v1178
        %v1207 = vadd.f32 %v1136, %v1178
        %v1208 = vadd.f32 %v1137, %v1178
        %v1209 = vadd.f32 %v1138, %v1178
        %v1210 = vadd.f32 %v1139, %v1178
        %v1211 = vadd.f32 %v1140, %v1178
        %v1212 = vadd.f32 %v1141, %v1178
        %v1213 = vadd.f32 %v1142, %v1178
        %v1214 = vadd.f32 %v1143, %v1178
        %v1215 = vadd.f32 %v1144, %v1178
        %v1216 = vadd.f32 %v1145, %v1178
        %v1217 = vadd.f32 %v1146, %v1178
        %v1218 = vadd.f32 %v1147, %v1178
        %v1219 = vadd.f32 %v1148, %v1178
        %v1220 = vadd.f32 %v1149, %v1178
        %v1221 = vadd.f32 %v1150, %v1178
        %v1222 = vadd.f32 %v1151, %v1178
        %v1223 = vadd.f32 %v1152, %v1178
        %v1224 = vadd.f32 %v1153, %v1178
        %v1225 = vadd.f32 %v1154, %v1178
        %v1226 = vadd.f32 %v1155, %v1178
        %v1227 = vadd.f32 %v1156, %v1178
        %v1228 = vadd.f32 %v1157, %v1178
        %v1229 = vadd.f32 %v1158, %v1178
        %v1230 = vadd.f32 %v1159, %v1178
        %v1231 = vadd.f32 %v1160, %v1178
        %v1232 = vadd.f32 %v1161, %v1178
        %v1233 = vadd.f32 %v1162, %v1178
        %v1234 = vadd.f32 %v1163, %v1178
        %v1235 = vadd.f32 %v1164, %v1178
        %v1236 = vadd.f32 %v1165, %v1178
        %v1237 = vadd.f32 %v1166, %v1178
        %v1238 = vadd.f32 %v1167, %v1178
        %v1239 = vadd.f32 %v1168, %v1178
        %v1240 = vadd.f32 %v1169, %v1178
        %v1241 = vadd.f32 %v1170, %v1178
        %v1242 = vadd.f32 %v1171, %v1178
        %v1243 = vadd.f32 %v1172, %v1178
        %v1244 = vmax.f32 %v1180, 0.0
        %v1245 = vmax.f32 %v1181, 0.0
        %v1246 = vmax.f32 %v1182, 0.0
        %v1247 = vmax.f32 %v1183, 0.0
        %v1248 = vmax.f32 %v1184, 0.0
        %v1249 = vmax.f32 %v1185, 0.0
        %v1250 = vmax.f32 %v1186, 0.0
        %v1251 = vmax.f32 %v1187, 0.0
        %v1252 = vmax.f32 %v1188, 0.0
        %v1253 = vmax.f32 %v1189, 0.0
        %v1254 = vmax.f32 %v1190, 0.0
        %v1255 = vmax.f32 %v1191, 0.0
        %v1256 = vmax.f32 %v1192, 0.0
        %v1257 = vmax.f32 %v1193, 0.0
        %v1258 = vmax.f32 %v1194, 0.0
        %v1259 = vmax.f32 %v1195, 0.0
        %v1260 = vmax.f32 %v1196, 0.0
        %v1261 = vmax.f32 %v1197, 0.0
        %v1262 = vmax.f32 %v1198, 0.0
        %v1263 = vmax.f32 %v1199, 0.0
        %v1264 = vmax.f32 %v1200, 0.0
        %v1265 = vmax.f32 %v1201, 0.0
        %v1266 = vmax.f32 %v1202, 0.0
        %v1267 = vmax.f32 %v1203, 0.0
        %v1268 = vmax.f32 %v1204, 0.0
        %v1269 = vmax.f32 %v1205, 0.0
        %v1270 = vmax.f32 %v1206, 0.0
        %v1271 = vmax.f32 %v1207, 0.0
        %v1272 = vmax.f32 %v1208, 0.0
        %v1273 = vmax.f32 %v1209, 0.0
        %v1274 = vmax.f32 %v1210, 0.0
        %v1275 = vmax.f32 %v1211, 0.0
        %v1276 = vmax.f32 %v1212, 0.0
        %v1277 = vmax.f32 %v1213, 0.0
        %v1278 = vmax.f32 %v1214, 0.0
        %v1279 = vmax.f32 %v1215, 0.0
        %v1280 = vmax.f32 %v1216, 0.0
        %v1281 = vmax.f32 %v1217, 0.0
        %v1282 = vmax.f32 %v1218, 0.0
        %v1283 = vmax.f32 %v1219, 0.0
        %v1284 = vmax.f32 %v1220, 0.0
        %v1285 = vmax.f32 %v1221, 0.0
        %v1286 = vmax.f32 %v1222, 0.0
        %v1287 = vmax.f32 %v1223, 0.0
        %v1288 = vmax.f32 %v1224, 0.0
        %v1289 = vmax.f32 %v1225, 0.0
        %v1290 = vmax.f32 %v1226, 0.0
        %v1291 = vmax.f32 %v1227, 0.0
        %v1292 = vmax.f32 %v1228, 0.0
        %v1293 = vmax.f32 %v1229, 0.0
        %v1294 = vmax.f32 %v1230, 0.0
        %v1295 = vmax.f32 %v1231, 0.0
        %v1296 = vmax.f32 %v1232, 0.0
        %v1297 = vmax.f32 %v1233, 0.0
        %v1298 = vmax.f32 %v1234, 0.0
        %v1299 = vmax.f32 %v1235, 0.0
        %v1300 = vmax.f32 %v1236, 0.0
        %v1301 = vmax.f32 %v1237, 0.0
        %v1302 = vmax.f32 %v1238, 0.0
        %v1303 = vmax.f32 %v1239, 0.0
        %v1304 = vmax.f32 %v1240, 0.0
        %v1305 = vmax.f32 %v1241, 0.0
        %v1306 = vmax.f32 %v1242, 0.0
        %v1307 = vmax.f32 %v1243, 0.0
        %1308 = vst [vmem:[%s289] sm:$0xff] %v1244
        %1309 = vst [vmem:[%s289 + $0x8] sm:$0xff] %v1245
        %1310 = vst [vmem:[%s289 + $0x10] sm:$0xff] %v1246
        %1311 = vst [vmem:[%s289 + $0x18] sm:$0xff] %v1247
        %1312 = vst [vmem:[%s289 + $0x20] sm:$0xff] %v1248
        %1313 = vst [vmem:[%s289 + $0x28] sm:$0xff] %v1249
        %1314 = vst [vmem:[%s289 + $0x30] sm:$0xff] %v1250
        %1315 = vst [vmem:[%s289 + $0x38] sm:$0xff] %v1251
        %1316 = vst [vmem:[%s289 + $0x40] sm:$0xff] %v1252
        %1317 = vst [vmem:[%s289 + $0x48] sm:$0xff] %v1253
        %1318 = vst [vmem:[%s289 + $0x50] sm:$0xff] %v1254
        %1319 = vst [vmem:[%s289 + $0x58] sm:$0xff] %v1255
        %1320 = vst [vmem:[%s289 + $0x60] sm:$0xff] %v1256
        %1321 = vst [vmem:[%s289 + $0x68] sm:$0xff] %v1257
        %1322 = vst [vmem:[%s289 + $0x70] sm:$0xff] %v1258
        %1323 = vst [vmem:[%s289 + $0x78] sm:$0xff] %v1259
        %1324 = vst [vmem:[%s289 + $0x80] sm:$0xff] %v1260
        %1325 = vst [vmem:[%s289 + $0x88] sm:$0xff] %v1261
        %1326 = vst [vmem:[%s289 + $0x90] sm:$0xff] %v1262
        %1327 = vst [vmem:[%s289 + $0x98] sm:$0xff] %v1263
        %1328 = vst [vmem:[%s289 + $0xa0] sm:$0xff] %v1264
        %1329 = vst [vmem:[%s289 + $0xa8] sm:$0xff] %v1265
        %1330 = vst [vmem:[%s289 + $0xb0] sm:$0xff] %v1266
        %1331 = vst [vmem:[%s289 + $0xb8] sm:$0xff] %v1267
        %1332 = vst [vmem:[%s289 + $0xc0] sm:$0xff] %v1268
        %1333 = vst [vmem:[%s289 + $0xc8] sm:$0xff] %v1269
        %1334 = vst [vmem:[%s289 + $0xd0] sm:$0xff] %v1270
        %1335 = vst [vmem:[%s289 + $0xd8] sm:$0xff] %v1271
        %1336 = vst [vmem:[%s289 + $0xe0] sm:$0xff] %v1272
        %1337 = vst [vmem:[%s289 + $0xe8] sm:$0xff] %v1273
        %1338 = vst [vmem:[%s289 + $0xf0] sm:$0xff] %v1274
        %1339 = vst [vmem:[%s289 + $0xf8] sm:$0xff] %v1275
        %1340 = vst [vmem:[%s289 + $0x100] sm:$0xff] %v1276
        %1341 = vst [vmem:[%s289 + $0x108] sm:$0xff] %v1277
        %1342 = vst [vmem:[%s289 + $0x110] sm:$0xff] %v1278
        %1343 = vst [vmem:[%s289 + $0x118] sm:$0xff] %v1279
        %1344 = vst [vmem:[%s289 + $0x120] sm:$0xff] %v1280
        %1345 = vst [vmem:[%s289 + $0x128] sm:$0xff] %v1281
        %1346 = vst [vmem:[%s289 + $0x130] sm:$0xff] %v1282
        %1347 = vst [vmem:[%s289 + $0x138] sm:$0xff] %v1283
        %1348 = vst [vmem:[%s289 + $0x140] sm:$0xff] %v1284
        %1349 = vst [vmem:[%s289 + $0x148] sm:$0xff] %v1285
        %1350 = vst [vmem:[%s289 + $0x150] sm:$0xff] %v1286
        %1351 = vst [vmem:[%s289 + $0x158] sm:$0xff] %v1287
        %1352 = vst [vmem:[%s289 + $0x160] sm:$0xff] %v1288
        %1353 = vst [vmem:[%s289 + $0x168] sm:$0xff] %v1289
        %1354 = vst [vmem:[%s289 + $0x170] sm:$0xff] %v1290
        %1355 = vst [vmem:[%s289 + $0x178] sm:$0xff] %v1291
        %1356 = vst [vmem:[%s289 + $0x180] sm:$0xff] %v1292
        %1357 = vst [vmem:[%s289 + $0x188] sm:$0xff] %v1293
        %1358 = vst [vmem:[%s289 + $0x190] sm:$0xff] %v1294
        %1359 = vst [vmem:[%s289 + $0x198] sm:$0xff] %v1295
        %1360 = vst [vmem:[%s289 + $0x1a0] sm:$0xff] %v1296
        %1361 = vst [vmem:[%s289 + $0x1a8] sm:$0xff] %v1297
        %1362 = vst [vmem:[%s289 + $0x1b0] sm:$0xff] %v1298
        %1363 = vst [vmem:[%s289 + $0x1b8] sm:$0xff] %v1299
        %1364 = vst [vmem:[%s289 + $0x1c0] sm:$0xff] %v1300
        %1365 = vst [vmem:[%s289 + $0x1c8] sm:$0xff] %v1301
        %1366 = vst [vmem:[%s289 + $0x1d0] sm:$0xff] %v1302
        %1367 = vst [vmem:[%s289 + $0x1d8] sm:$0xff] %v1303
        %1368 = vst [vmem:[%s289 + $0x1e0] sm:$0xff] %v1304
        %1369 = vst [vmem:[%s289 + $0x1e8] sm:$0xff] %v1305
        %1370 = vst [vmem:[%s289 + $0x1f0] sm:$0xff] %v1306
        %1371 = vst [vmem:[%s289 + $0x1f8] sm:$0xff] %v1307
        %s1372 = sand.u32 %s159, 1
        %s1373 = scalar_lea.sflag [#allocation4], %s1372
        %s1374 = sand.u32 %s159, 1
        %s1375 = smul.addr %s1374, 512
        %s1376 = scalar_lea.vmem [#allocation7], %s1375
        // Predicated region
        $region45: #{tpu_custom_call.1} parent=35 // pred_check
          %p1377 = pneg %p169
        $region46: #{tpu_custom_call.1} parent=35 // pred_check_branch
          %1379 = sbr.rel (%p1377) target = $region48
        $region47: #{tpu_custom_call.1} parent=35 // pred_region
          %s1380 = smul.u32 64, %s27
          %s1382 = ssub.s32 8192, 8192
          %1383 = vsyncadd %s1373, %s1382
          %s1384 = sadd.s32 %s28, %s1380
          %s1385 = smul.addr %s1384, 128
          %s1386 = scalar_lea.hbm %s4, %s1385
          %s1387 = sshll.u32 %s1376, 4
          %s1388 = int_to_ptr.vmem [resolvable:$true] %s1387
          %1393 = dma.vmem_to_hbm [thread:$0]  %s1388, 8192, %s1386, %s1373, 128, 128, 8
        $region48: #{tpu_custom_call.1} parent=35 // pred_fallthru
          _
      $region36: #{tpu_custom_call.1} parent=5 // pred_fallthru
        _
      %p1394 = scmp.le.s32.totalorder 2, %s17
      // Predicated region
      $region49: #{tpu_custom_call.1} parent=5 // pred_check
        %p1395 = pneg %p1394
      $region50: #{tpu_custom_call.1} parent=5 // pred_check_branch
        %1397 = sbr.rel (%p1395) target = $region52
      $region51: #{tpu_custom_call.1} parent=5 // pred_region
        %s1398 = ssub.s32 %s17, 2
        // Predicated region
        $region53: #{tpu_custom_call.1} parent=51 // pred_check
          %p1399 = pneg %p175
        $region54: #{tpu_custom_call.1} parent=51 // pred_check_branch
          %1401 = sbr.rel (%p1399) target = $region56
        $region55: #{tpu_custom_call.1} parent=51 // pred_region
          %s1402 = sand.u32 %s160, 1
          %s1403 = scalar_lea.sflag [#allocation4], %s1402
          %s1404 = sand.u32 %s160, 1
          %s1405 = smul.addr %s1404, 512
          %s1406 = scalar_lea.vmem [#allocation7], %s1405
          %1407 = dma.done %s1403, 8192
        $region56: #{tpu_custom_call.1} parent=51 // pred_fallthru
          _
      $region52: #{tpu_custom_call.1} parent=5 // pred_fallthru
        _
    $region6: #{tpu_custom_call.1} parent=1 // loop_footer
      %s21 = sadd.s32 1, %s17
    $region7: #{tpu_custom_call.1} parent=1 // loop_footer_branch
      %16 = sbr.rel target = $region3
    $region8: #{tpu_custom_call.1} parent=1 // loop_exit
      _
    %1408 = vsyncpa [#allocation3], 1
    %s1409 = scalar_lea.sflag [#allocation3], 1
    %1410 = vsyncpa %s1409, 1
    %1411 = vsyncpa [#allocation6], 1
    %1412 = vsyncpa [#allocation4], 1
    %s1413 = scalar_lea.sflag [#allocation4], 1
    %1414 = vsyncpa %s1413, 1

</llo_original>
